<compile_context>
chip_gen: v5e
topology: v5e:2x2
jax: 0.10.0
libtpu: 0.0.40
codegen_flags: <defaults>
</compile_context>

<pallas_src>
import functools
import math

import jax
import jax.numpy as jnp
from jax.experimental import pallas as pl
from jax.experimental.pallas import tpu as pltpu

EPS = 1.0
XI = 1e-6
N_ITERATION = 1

_NEG_BIG = -1e30  # padded-logit value (finite on purpose)


def _round_up(x, m):
    return ((x + m - 1) // m) * m


def _batch_tile(b):
    """Batch tile for the (TB, D)-streamed kernels.

    * b <= 256      : single tile (block == full array, no extra padding).
    * 256 < b < 1k  : TB = 128 -> >=3 grid steps so both v7x TensorCores get
                      work and the DMA pipeline has something to overlap.
    * b >= 1k       : TB = 256 fills the 256-wide MXU M dim on v6e/v7x; with
                      the bf16 g stream the per-step VMEM stays small enough
                      for v5e's 16 MiB default scoped VMEM as well.
    """
    if b <= 256:
        return _round_up(b, 8)
    return 128 if b < 1024 else 256


# ----------------------------------------------------------------------------
# Kernel 1: on-chip random unit direction.
#   d = normalize(randn)  with the randn generated by the TPU PRNG (Box-Muller
#   from prng_random_bits) -- the HBM randn write + read is eliminated.
# ----------------------------------------------------------------------------
def _rand_dir_kernel(seed_ref, o_ref):
    pltpu.prng_seed(seed_ref[0] + pl.program_id(0))   # decorrelate batch tiles
    shape = o_ref.shape                                # (TB, D)

    def _u23(bits):
        # low 23 bits -> float32 counts in [0, 2^23)
        if bits.dtype != jnp.int32:
            bits = pltpu.bitcast(bits, jnp.int32)
        return (bits & ((1 << 23) - 1)).astype(jnp.float32)

    c1 = _u23(pltpu.prng_random_bits(shape))
    c2 = _u23(pltpu.prng_random_bits(shape))
    u1 = (c1 + 1.0) * (1.0 / (1 << 23))                # (0, 1]
    theta = c2 * (2.0 * math.pi / (1 << 23))           # [0, 2*pi)
    z = jnp.sqrt(-2.0 * jnp.log(u1)) * jnp.cos(theta)  # Box-Muller N(0,1)

    # normalize (PyTorch's two-step form, including its epsilons)
    amax = jnp.max(jnp.abs(z), axis=1, keepdims=True)
    d = z * pl.reciprocal(1e-12 + amax, approx=True)   # ~2^-12 rel tol vs exact
    ss = jnp.sum(d * d, axis=1, keepdims=True)
    o_ref[...] = (d * jax.lax.rsqrt(1e-6 + ss)).astype(o_ref.dtype)


# ----------------------------------------------------------------------------
# Kernel 2: standalone normalize (inter-iteration d = normalize(g), and the
# fallback path for the initial direction).  Dtype-preserving, math in f32.
# ----------------------------------------------------------------------------
def _normalize_kernel(v_ref, o_ref):
    v = v_ref[...].astype(jnp.float32)
    amax = jnp.max(jnp.abs(v), axis=1, keepdims=True)
    v = v * pl.reciprocal(1e-12 + amax, approx=True)
    ss = jnp.sum(v * v, axis=1, keepdims=True)
    o_ref[...] = (v * jax.lax.rsqrt(1e-6 + ss)).astype(o_ref.dtype)


def normalize(v):
    """Per-sample abs-max + L2 normalization over the flat feature axis (B, D)."""
    b, d = v.shape
    tb = _batch_tile(b)
    bp = _round_up(b, tb)
    vp = v if bp == b else jnp.pad(v, ((0, bp - b), (0, 0)))
    out = pl.pallas_call(
        _normalize_kernel,
        out_shape=jax.ShapeDtypeStruct((bp, d), v.dtype),
        grid=(bp // tb,),
        in_specs=[pl.BlockSpec((tb, d), lambda i: (i, 0))],
        out_specs=pl.BlockSpec((tb, d), lambda i: (i, 0)),
        compiler_params=pltpu.CompilerParams(dimension_semantics=("parallel",)),
    )(vp)
    return out if bp == b else out[:b]


def _random_unit_direction(seed, key, b, d_dim):
    """normalize(randn(b, d_dim)) in bf16, generated on-chip when possible."""
    tb = _batch_tile(b)
    bp = _round_up(b, tb)
    try:
        out = pl.pallas_call(
            _rand_dir_kernel,
            out_shape=jax.ShapeDtypeStruct((bp, d_dim), jnp.bfloat16),
            grid=(bp // tb,),
            in_specs=[pl.BlockSpec(memory_space=pltpu.MemorySpace.SMEM)],
            out_specs=pl.BlockSpec((tb, d_dim), lambda i: (i, 0)),
            compiler_params=pltpu.CompilerParams(
                dimension_semantics=("parallel",)),
        )(seed)
        out = jax.block_until_ready(out)
        return out if bp == b else out[:b]
    except Exception:
        # Fallback: HBM randn + Pallas normalize (if the on-chip PRNG /
        # Box-Muller path does not lower on this JAX / libtpu build).
        d0 = jax.random.normal(key, (b, d_dim), jnp.float32).astype(jnp.bfloat16)
        return normalize(d0)


# ----------------------------------------------------------------------------
# Kernel 3: fused final VAT loss (per batch tile):
#   d     = normalize(g)                        (fused; g arrives bf16)
#   y_hat = y0 + eps * (d @ W)                  (linear model identity; x never
#                                                streamed into the kernel)
#   kld   = sum(q * (lsm_q - lsm_p)), q = exp(log_softmax(y_hat))
#   out   = kld * mask  written lane-dense as a (1, TB) row
# ----------------------------------------------------------------------------
def _vat_loss_kernel(g_ref, w_ref, yb_ref, yt_ref, m_ref, o_ref, *, eps):
    g = g_ref[...].astype(jnp.float32)                         # (TB, D)

    amax = jnp.max(jnp.abs(g), axis=1, keepdims=True)
    d = g * pl.reciprocal(1e-12 + amax, approx=True)
    ss = jnp.sum(d * d, axis=1, keepdims=True)
    d = d * jax.lax.rsqrt(1e-6 + ss)

    dw = jnp.dot(d.astype(jnp.bfloat16), w_ref[...],
                 preferred_element_type=jnp.float32)           # (TB, Kp) MXU
    y_hat = yb_ref[...] + eps * dw                             # pad cols stay ~ -1e30

    # q = softmax(y_hat) via exp(log_softmax): exactly consistent with lsm_q.
    zdev = y_hat - jnp.max(y_hat, axis=1, keepdims=True)
    lse_q = jnp.log(jnp.sum(jnp.exp(zdev), axis=1, keepdims=True))
    lsm_q = zdev - lse_q
    q = jnp.exp(lsm_q)                                         # pad cols underflow to 0

    yt = yt_ref[...]
    tdev = yt - jnp.max(yt, axis=1, keepdims=True)
    lsm_p = tdev - jnp.log(jnp.sum(jnp.exp(tdev), axis=1, keepdims=True))

    kld = jnp.sum(q * (lsm_q - lsm_p), axis=1, keepdims=True)  # (TB, 1)
    # lane-dense store: (1, TB) unmasked vst instead of a last-dim-1 block
    o_ref[...] = kld.reshape(m_ref.shape) * m_ref[...]


def vat_loss_pallas(g, W, y_base, y_tgt, mask, eps):
    """Fused VAT loss.  g: (B, D) gradient direction (any float dtype),
    W: (D, K) weights, y_base: (B, K) clean logits model(x), y_tgt: (B, K)
    target logits (y.detach()), mask: (B,).  Returns scalar (kld*mask).mean()."""
    B, D = g.shape
    K = y_base.shape[1]
    TB = _batch_tile(B)
    Bp = _round_up(B, TB)
    Kp = _round_up(K, 128)                                     # lane-dense logits

    g_p = g if g.dtype == jnp.bfloat16 else g.astype(jnp.bfloat16)
    if Bp != B:
        g_p = jnp.pad(g_p, ((0, Bp - B), (0, 0)))

    W_p = W if W.dtype == jnp.bfloat16 else W.astype(jnp.bfloat16)
    if Kp != K:
        W_p = jnp.pad(W_p, ((0, 0), (0, Kp - K)))

    def _pad_logits(v):
        v = v if v.dtype == jnp.float32 else v.astype(jnp.float32)
        if Kp != K:
            v = jnp.pad(v, ((0, 0), (0, Kp - K)), constant_values=_NEG_BIG)
        if Bp != B:
            v = jnp.pad(v, ((0, Bp - B), (0, 0)))
        return v

    yb_p = _pad_logits(y_base)
    yt_p = _pad_logits(y_tgt)

    m_p = mask.reshape(1, B).astype(jnp.float32)
    if Bp != B:
        m_p = jnp.pad(m_p, ((0, 0), (0, Bp - B)))

    grid = (Bp // TB,)

    def _run(single_buffer_consts):
        if single_buffer_consts:
            # Grid-invariant W: single-buffer it (double-buffering a constant
            # block is pure VMEM waste at large D).
            w_spec = pl.BlockSpec((D, Kp), lambda i: (0, 0),
                                  pipeline_mode=pl.Buffered(1))
        else:
            w_spec = pl.BlockSpec((D, Kp), lambda i: (0, 0))
        return pl.pallas_call(
            functools.partial(_vat_loss_kernel, eps=eps),
            out_shape=jax.ShapeDtypeStruct((1, Bp), jnp.float32),
            grid=grid,
            in_specs=[
                pl.BlockSpec((TB, D), lambda i: (i, 0)),      # g   (bf16 stream)
                w_spec,                                        # W   (bf16, resident)
                pl.BlockSpec((TB, Kp), lambda i: (i, 0)),     # y0  = model(x)
                pl.BlockSpec((TB, Kp), lambda i: (i, 0)),     # y   target logits
                pl.BlockSpec((1, TB), lambda i: (0, i)),      # mask (lane-dense)
            ],
            out_specs=pl.BlockSpec((1, TB), lambda i: (0, i)),
            compiler_params=pltpu.CompilerParams(
                dimension_semantics=("parallel",)),
        )(g_p, W_p, yb_p, yt_p, m_p)

    try:
        per_sample = jax.block_until_ready(_run(True))
    except Exception:  # pipeline_mode / pl.Buffered(1) unsupported on this build
        per_sample = _run(False)

    # masked mean over the TRUE batch size: matches PyTorch (kld * mask).mean()
    return jnp.sum(per_sample) / B


# ----------------------------------------------------------------------------
# Plain-JAX KL reference used only for the power-iteration gradient (autodiff).
# ----------------------------------------------------------------------------
def _log_softmax(z):
    zdev = z - jnp.max(z, axis=1, keepdims=True)
    return zdev - jnp.log(jnp.sum(jnp.exp(zdev), axis=1, keepdims=True))


def _kld_ref(q_logit, p_logit):
    q = jax.nn.softmax(q_logit, axis=1)
    return jnp.sum(q * (_log_softmax(q_logit) - _log_softmax(p_logit)), axis=1)


# ----------------------------------------------------------------------------
# VAT.forward
# ----------------------------------------------------------------------------
def vat_forward(x, y, W, b, mask, key, eps=EPS, xi=XI, n_iteration=N_ITERATION):
    # freeze_bn / activate_bn: no-ops -- the synthetic linear model has no BatchNorm.
    B = x.shape[0]
    D = x.size // B
    W = W.astype(jnp.float32)
    W_bf = W.astype(jnp.bfloat16)
    bias = b.astype(jnp.float32)

    # Clean logits model(x), computed ONCE in f32.  Because the synthetic model
    # is linear, model(x + a*d) == y0 + a*(d @ W), so x is read exactly once
    # here and never streamed into the Pallas kernels or the autodiff path.
    y0 = x.reshape(B, D).astype(jnp.float32) @ W + bias
    y_det = jax.lax.stop_gradient(y).astype(jnp.float32)        # y.detach()

    # d = normalize(randn_like(x)) -- generated & normalized on-chip (bf16).
    seed = jax.random.randint(key, (1,), 0, jnp.iinfo(jnp.int32).max,
                              dtype=jnp.int32)
    d = _random_unit_direction(seed, key, B, D)

    g = d
    for it in range(n_iteration):
        def obj(d_flat):
            y_hat = y0 + xi * jnp.dot(d_flat, W_bf,
                                      preferred_element_type=jnp.float32)
            return jnp.mean(_kld_ref(y_det, y_hat))              # kld(y.detach(), y_hat)
        # TODO(synk): the power-iteration gradient (torch.autograd.grad in the
        # reference) uses plain-JAX autodiff -- pallas_call has no automatic VJP;
        # the linearity keeps this path off the (B, D) x stream entirely.
        g = jax.lax.stop_gradient(jax.grad(obj)(d))              # bf16 (B, D)
        if it < n_iteration - 1:
            d = normalize(g)                                     # Pallas kernel

    # Fused Pallas kernel: normalize(g) -> y_hat = y0 + eps*(d @ W) ->
    # kld(y_hat, y_det) * mask; masked mean over the true B done outside.
    return vat_loss_pallas(g, W_bf, y0, y_det, mask, eps)


if __name__ == "__main__":
    key = jax.random.PRNGKey(0)
    kx, kw, kb, kd = jax.random.split(key, 4)

    B, C, H, Wdim = 2, 4, 16, 16
    K = 8
    D = C * H * Wdim

    x = jax.random.normal(kx, (B, C, H, Wdim), jnp.float32)
    W = jax.random.normal(kw, (D, K), jnp.float32) * 0.05       # synthetic linear "model"
    bvec = jax.random.normal(kb, (K,), jnp.float32) * 0.01
    y = x.reshape(B, D) @ W + bvec                              # target logits = model(x)
    mask = jnp.ones((B,), jnp.float32)

    loss = vat_forward(x, y, W, bvec, mask, kd)
    loss = jax.block_until_ready(loss)
    assert loss.shape == () and bool(jnp.isfinite(loss))
    print("KERNEL_OK")
</pallas_src>

<mosaic_0001>
module attributes {stable_mosaic.version = 11 : i64} {
  func.func @_rand_dir_kernel(%arg0: i32, %arg1: memref<1xi32, #tpu.memory_space<smem>>, %arg2: memref<8x1024xbf16, #tpu.memory_space<vmem>>) attributes {dimension_semantics = [#tpu.dimension_semantics<parallel>], iteration_bounds = array<i64: 1>, scalar_prefetch = 0 : i64, scratch_operands = 0 : i64, tpu.core_type = #tpu.core_type<tc>, window_params = [{transform_indices = @transform_0, window_bounds = array<i64: 1>}, {transform_indices = @transform_1, window_bounds = array<i64: 8, 1024>}]} {
    %c0 = arith.constant 0 : index
    %0 = memref.load %arg1[%c0] : memref<1xi32, #tpu.memory_space<smem>>
    %1 = arith.addi %0, %arg0 : i32
    "tpu.prng_set_seed_32"(%1) : (i32) -> ()
    %2 = "tpu.prng_random_bits"() : () -> vector<8x1024xi32>
    %c8388607_i32 = arith.constant 8388607 : i32
    %3 = vector.broadcast %c8388607_i32 : i32 to vector<8x1024xi32>
    %4 = arith.andi %2, %3 : vector<8x1024xi32>
    %5 = arith.sitofp %4 : vector<8x1024xi32> to vector<8x1024xf32>
    %6 = "tpu.prng_random_bits"() : () -> vector<8x1024xi32>
    %c8388607_i32_0 = arith.constant 8388607 : i32
    %7 = vector.broadcast %c8388607_i32_0 : i32 to vector<8x1024xi32>
    %8 = arith.andi %6, %7 : vector<8x1024xi32>
    %9 = arith.sitofp %8 : vector<8x1024xi32> to vector<8x1024xf32>
    %cst = arith.constant 1.000000e+00 : f32
    %10 = vector.broadcast %cst : f32 to vector<8x1024xf32>
    %11 = arith.addf %5, %10 : vector<8x1024xf32>
    %cst_1 = arith.constant 1.1920929E-7 : f32
    %12 = vector.broadcast %cst_1 : f32 to vector<8x1024xf32>
    %13 = arith.mulf %11, %12 : vector<8x1024xf32>
    %cst_2 = arith.constant 7.49014077E-7 : f32
    %14 = vector.broadcast %cst_2 : f32 to vector<8x1024xf32>
    %15 = arith.mulf %9, %14 : vector<8x1024xf32>
    %16 = math.log %13 : vector<8x1024xf32>
    %cst_3 = arith.constant -2.000000e+00 : f32
    %17 = vector.broadcast %cst_3 : f32 to vector<8x1024xf32>
    %18 = arith.mulf %17, %16 : vector<8x1024xf32>
    %19 = math.sqrt %18 : vector<8x1024xf32>
    %20 = math.cos %15 : vector<8x1024xf32>
    %21 = arith.mulf %19, %20 : vector<8x1024xf32>
    %22 = math.absf %21 : vector<8x1024xf32>
    %cst_4 = arith.constant dense<0xFF800000> : vector<8xf32>
    %23 = vector.multi_reduction <maximumf>, %22, %cst_4 [1] : vector<8x1024xf32> to vector<8xf32>
    %24 = vector.shape_cast %23 : vector<8xf32> to vector<8x1xf32>
    %cst_5 = arith.constant 9.99999996E-13 : f32
    %25 = vector.broadcast %cst_5 : f32 to vector<8x1xf32>
    %26 = arith.addf %25, %24 : vector<8x1xf32>
    %27 = tpu.reciprocal %26 {approx = true} : vector<8x1xf32> -> vector<8x1xf32>
    %28 = vector.broadcast %27 : vector<8x1xf32> to vector<8x1024xf32>
    %29 = arith.mulf %21, %28 : vector<8x1024xf32>
    %30 = arith.mulf %29, %29 : vector<8x1024xf32>
    %cst_6 = arith.constant dense<0.000000e+00> : vector<8xf32>
    %31 = vector.multi_reduction <add>, %30, %cst_6 [1] : vector<8x1024xf32> to vector<8xf32>
    %32 = vector.shape_cast %31 : vector<8xf32> to vector<8x1xf32>
    %cst_7 = arith.constant 9.99999997E-7 : f32
    %33 = vector.broadcast %cst_7 : f32 to vector<8x1xf32>
    %34 = arith.addf %33, %32 : vector<8x1xf32>
    %35 = math.rsqrt %34 : vector<8x1xf32>
    %36 = vector.broadcast %35 : vector<8x1xf32> to vector<8x1024xf32>
    %37 = arith.mulf %29, %36 : vector<8x1024xf32>
    %38 = arith.truncf %37 : vector<8x1024xf32> to vector<8x1024xbf16>
    %c0_8 = arith.constant 0 : index
    %c0_9 = arith.constant 0 : index
    %39 = vector.load %arg2[%c0_8, %c0_9] : memref<8x1024xbf16, #tpu.memory_space<vmem>>, vector<8x1024xbf16>
    tpu.vector_store %arg2[%c0_8, %c0_9], %38 {strides = array<i32>} : memref<8x1024xbf16, #tpu.memory_space<vmem>>, vector<8x1024xbf16>,
    return
  }
  func.func @transform_0(%arg0: i32) -> i32 {
    %c0_i32 = arith.constant 0 : i32
    %c0_i32_0 = arith.constant 0 : i32
    return %c0_i32 : i32
  }
  func.func @transform_1(%arg0: i32) -> (i32, i32) {
    %c0_i32 = arith.constant 0 : i32
    %c0_i32_0 = arith.constant 0 : i32
    return %arg0, %c0_i32 : i32, i32
  }
}

module attributes {stable_mosaic.version = 11 : i64} {
  func.func @_normalize_kernel(%arg0: i32, %arg1: memref<8x1024xbf16, #tpu.memory_space<vmem>>, %arg2: memref<8x1024xbf16, #tpu.memory_space<vmem>>) attributes {dimension_semantics = [#tpu.dimension_semantics<parallel>], iteration_bounds = array<i64: 1>, scalar_prefetch = 0 : i64, scratch_operands = 0 : i64, tpu.core_type = #tpu.core_type<tc>, window_params = [{transform_indices = @transform_0, window_bounds = array<i64: 8, 1024>}, {transform_indices = @transform_1, window_bounds = array<i64: 8, 1024>}]} {
    %c0 = arith.constant 0 : index
    %c0_0 = arith.constant 0 : index
    %0 = vector.load %arg1[%c0, %c0_0] : memref<8x1024xbf16, #tpu.memory_space<vmem>>, vector<8x1024xbf16>
    %1 = arith.extf %0 : vector<8x1024xbf16> to vector<8x1024xf32>
    %2 = math.absf %1 : vector<8x1024xf32>
    %cst = arith.constant dense<0xFF800000> : vector<8xf32>
    %3 = vector.multi_reduction <maximumf>, %2, %cst [1] : vector<8x1024xf32> to vector<8xf32>
    %4 = vector.shape_cast %3 : vector<8xf32> to vector<8x1xf32>
    %cst_1 = arith.constant 9.99999996E-13 : f32
    %5 = vector.broadcast %cst_1 : f32 to vector<8x1xf32>
    %6 = arith.addf %5, %4 : vector<8x1xf32>
    %7 = tpu.reciprocal %6 {approx = true} : vector<8x1xf32> -> vector<8x1xf32>
    %8 = vector.broadcast %7 : vector<8x1xf32> to vector<8x1024xf32>
    %9 = arith.mulf %1, %8 : vector<8x1024xf32>
    %10 = arith.mulf %9, %9 : vector<8x1024xf32>
    %cst_2 = arith.constant dense<0.000000e+00> : vector<8xf32>
    %11 = vector.multi_reduction <add>, %10, %cst_2 [1] : vector<8x1024xf32> to vector<8xf32>
    %12 = vector.shape_cast %11 : vector<8xf32> to vector<8x1xf32>
    %cst_3 = arith.constant 9.99999997E-7 : f32
    %13 = vector.broadcast %cst_3 : f32 to vector<8x1xf32>
    %14 = arith.addf %13, %12 : vector<8x1xf32>
    %15 = math.rsqrt %14 : vector<8x1xf32>
    %16 = vector.broadcast %15 : vector<8x1xf32> to vector<8x1024xf32>
    %17 = arith.mulf %9, %16 : vector<8x1024xf32>
    %18 = arith.truncf %17 : vector<8x1024xf32> to vector<8x1024xbf16>
    %c0_4 = arith.constant 0 : index
    %c0_5 = arith.constant 0 : index
    %19 = vector.load %arg2[%c0_4, %c0_5] : memref<8x1024xbf16, #tpu.memory_space<vmem>>, vector<8x1024xbf16>
    tpu.vector_store %arg2[%c0_4, %c0_5], %18 {strides = array<i32>} : memref<8x1024xbf16, #tpu.memory_space<vmem>>, vector<8x1024xbf16>,
    return
  }
  func.func @transform_0(%arg0: i32) -> (i32, i32) {
    %c0_i32 = arith.constant 0 : i32
    %c0_i32_0 = arith.constant 0 : i32
    return %arg0, %c0_i32 : i32, i32
  }
  func.func @transform_1(%arg0: i32) -> (i32, i32) {
    %c0_i32 = arith.constant 0 : i32
    %c0_i32_0 = arith.constant 0 : i32
    return %arg0, %c0_i32 : i32, i32
  }
}

</mosaic_0001>

<llo_original>
// kernel: tpu_custom_call.1
$region0: #{tpu_custom_call.1}
  #allocation0 [shape = 'u32[]', space=smem, size = 0x4, offset = 0x4, fixed_abs, tag = 'smem constant byte address 0x4 - core index']
  #allocation1 [shape = 'u32[72,128]{1,0:T(1,128)}', space=vmem, size = 0x9000, scoped, tag = 'internal scratch']
  #allocation2 [shape = 's32[1]{0:T(128)S(6)}', space=smem, size = 0x200, scoped, tag = 'scoped memory for tpu_custom_call.1']
  %s0 = inlined_call_operand.<no memory space> [shape: s32[1], index: 0, kind: input, shape index: {}]
  %s1 = inlined_call_operand.hbm [shape: bf16[8,1024], index: 1, kind: output, shape index: {}]
  %s2 = sld [smem:[#allocation0]]
  $region14: #{tpu_custom_call.1} parent=0
    _
  %s4 = ssub.s32 1, %s2
  %s5 = scalar_select 0, %s4, %s2
  %6 = sst [smem:[#allocation2]] %s0
  $region1: #{tpu_custom_call.1} parent=0
    #allocation3 [shape = 'u8[16384]{0}', space=vmem, size = 0x4000, scoped, tag = 'output window, operand 0, single buffered']
    #allocation4 [shape = 's32[1]{0}', space=sflag, size = 0x4, scoped, tag = 'scoped memory for tpu_custom_call.1']
    %7 = vsyncpa [#allocation4], 0
    // Predicated region
    $region2: #{tpu_custom_call.1} parent=1 // pred_check
      _
    $region3: #{tpu_custom_call.1} parent=1 // pred_check_branch
      %9 = sbr.rel (0) target = $region5
    $region4: #{tpu_custom_call.1} parent=1 // pred_region
      _
    $region5: #{tpu_custom_call.1} parent=1 // pred_fallthru
      _
    %s10 = sld [smem:[#allocation2]]
    %s11 = sadd.s32 %s10, 0
    %v12 = vlaneseq
    %v13 = vstv %s11
    %v14 = vxor.u32 %v13, %v13
    %v15 = vxor.u32 %v14, 466688986
    %v16 = vadd.s32 %v12, %v13
    %v17 = vadd.s32 %v16, %v16
    %v18 = vshll.u32 %v16, 13
    %v19 = vshrl.u32 %v16, 19
    %v20 = vor.u32 %v18, %v19
    %v21 = vxor.u32 %v17, %v20
    %v22 = vadd.s32 %v17, %v21
    %v23 = vshll.u32 %v21, 15
    %v24 = vshrl.u32 %v21, 17
    %v25 = vor.u32 %v23, %v24
    %v26 = vxor.u32 %v22, %v25
    %v27 = vadd.s32 %v22, %v26
    %v28 = vshll.u32 %v26, 26
    %v29 = vshrl.u32 %v26, 6
    %v30 = vor.u32 %v28, %v29
    %v31 = vxor.u32 %v27, %v30
    %v32 = vadd.s32 %v27, %v31
    %v33 = vshll.u32 %v31, 6
    %v34 = vshrl.u32 %v31, 26
    %v35 = vor.u32 %v33, %v34
    %v36 = vxor.u32 %v32, %v35
    %v37 = vadd.s32 %v32, %v13
    %v38 = vadd.s32 %v36, %v15
    %v39 = vadd.s32 %v38, 1
    %v40 = vadd.s32 %v37, %v39
    %v41 = vshll.u32 %v39, 17
    %v42 = vshrl.u32 %v39, 15
    %v43 = vor.u32 %v41, %v42
    %v44 = vxor.u32 %v40, %v43
    %v45 = vadd.s32 %v40, %v44
    %v46 = vshll.u32 %v44, 29
    %v47 = vshrl.u32 %v44, 3
    %v48 = vor.u32 %v46, %v47
    %v49 = vxor.u32 %v45, %v48
    %v50 = vadd.s32 %v45, %v49
    %v51 = vshll.u32 %v49, 16
    %v52 = vshrl.u32 %v49, 16
    %v53 = vor.u32 %v51, %v52
    %v54 = vxor.u32 %v50, %v53
    %v55 = vadd.s32 %v50, %v54
    %v56 = vshll.u32 %v54, 24
    %v57 = vshrl.u32 %v54, 8
    %v58 = vor.u32 %v56, %v57
    %v59 = vxor.u32 %v55, %v58
    %v60 = vadd.s32 %v55, %v15
    %v61 = vadd.s32 %v59, %v13
    %v62 = vadd.s32 %v61, 2
    %v63 = vadd.s32 %v60, %v62
    %v64 = vshll.u32 %v62, 13
    %v65 = vshrl.u32 %v62, 19
    %v66 = vor.u32 %v64, %v65
    %v67 = vxor.u32 %v63, %v66
    %v68 = vadd.s32 %v63, %v67
    %v69 = vshll.u32 %v67, 15
    %v70 = vshrl.u32 %v67, 17
    %v71 = vor.u32 %v69, %v70
    %v72 = vxor.u32 %v68, %v71
    %v73 = vadd.s32 %v68, %v72
    %v74 = vshll.u32 %v72, 26
    %v75 = vshrl.u32 %v72, 6
    %v76 = vor.u32 %v74, %v75
    %v77 = vxor.u32 %v73, %v76
    %v78 = vadd.s32 %v73, %v77
    %v79 = vshll.u32 %v77, 6
    %v80 = vshrl.u32 %v77, 26
    %v81 = vor.u32 %v79, %v80
    %v82 = vxor.u32 %v78, %v81
    %v83 = vadd.s32 %v78, %v13
    %v84 = vadd.s32 %v82, %v13
    %v85 = vadd.s32 %v84, 3
    %v86 = vadd.s32 %v83, %v85
    %v87 = vshll.u32 %v85, 17
    %v88 = vshrl.u32 %v85, 15
    %v89 = vor.u32 %v87, %v88
    %v90 = vxor.u32 %v86, %v89
    %v91 = vadd.s32 %v86, %v90
    %v92 = vshll.u32 %v90, 29
    %v93 = vshrl.u32 %v90, 3
    %v94 = vor.u32 %v92, %v93
    %v95 = vxor.u32 %v91, %v94
    %v96 = vadd.s32 %v91, %v95
    %v97 = vshll.u32 %v95, 16
    %v98 = vshrl.u32 %v95, 16
    %v99 = vor.u32 %v97, %v98
    %v100 = vxor.u32 %v96, %v99
    %v101 = vadd.s32 %v96, %v100
    %v102 = vshll.u32 %v100, 24
    %v103 = vshrl.u32 %v100, 8
    %v104 = vor.u32 %v102, %v103
    %v105 = vxor.u32 %v101, %v104
    %v106 = vadd.s32 %v101, %v13
    %v107 = vadd.s32 %v105, %v15
    %v108 = vadd.s32 %v107, 4
    %v109 = vadd.s32 %v106, %v108
    %v110 = vshll.u32 %v108, 13
    %v111 = vshrl.u32 %v108, 19
    %v112 = vor.u32 %v110, %v111
    %v113 = vxor.u32 %v109, %v112
    %v114 = vadd.s32 %v109, %v113
    %v115 = vshll.u32 %v113, 15
    %v116 = vshrl.u32 %v113, 17
    %v117 = vor.u32 %v115, %v116
    %v118 = vxor.u32 %v114, %v117
    %v119 = vadd.s32 %v114, %v118
    %v120 = vshll.u32 %v118, 26
    %v121 = vshrl.u32 %v118, 6
    %v122 = vor.u32 %v120, %v121
    %v123 = vxor.u32 %v119, %v122
    %v124 = vadd.s32 %v119, %v123
    %v125 = vshll.u32 %v123, 6
    %v126 = vshrl.u32 %v123, 26
    %v127 = vor.u32 %v125, %v126
    %v128 = vxor.u32 %v124, %v127
    %v129 = vadd.s32 %v124, %v15
    %v130 = vadd.s32 %v128, %v13
    %v131 = vadd.s32 %v130, 5
    %v132 = vxor.u32 %v129, %v131
    %133 = set.rngseed %v132
    %v134 = vrng
    %v135 = vrng
    %v136 = vrng
    %v137 = vrng
    %v138 = vrng
    %v139 = vrng
    %v140 = vrng
    %v141 = vrng
    %v142 = vand.u32 %v134, 8388607
    %v143 = vand.u32 %v135, 8388607
    %v144 = vand.u32 %v136, 8388607
    %v145 = vand.u32 %v137, 8388607
    %v146 = vand.u32 %v138, 8388607
    %v147 = vand.u32 %v139, 8388607
    %v148 = vand.u32 %v140, 8388607
    %v149 = vand.u32 %v141, 8388607
    %v150 = vcvt.s32.f32 %v142
    %v151 = vcvt.s32.f32 %v143
    %v152 = vcvt.s32.f32 %v144
    %v153 = vcvt.s32.f32 %v145
    %v154 = vcvt.s32.f32 %v146
    %v155 = vcvt.s32.f32 %v147
    %v156 = vcvt.s32.f32 %v148
    %v157 = vcvt.s32.f32 %v149
    %v158 = vrng
    %v159 = vrng
    %v160 = vrng
    %v161 = vrng
    %v162 = vrng
    %v163 = vrng
    %v164 = vrng
    %v165 = vrng
    %v166 = vand.u32 %v158, 8388607
    %v167 = vand.u32 %v159, 8388607
    %v168 = vand.u32 %v160, 8388607
    %v169 = vand.u32 %v161, 8388607
    %v170 = vand.u32 %v162, 8388607
    %v171 = vand.u32 %v163, 8388607
    %v172 = vand.u32 %v164, 8388607
    %v173 = vand.u32 %v165, 8388607
    %v174 = vcvt.s32.f32 %v166
    %v175 = vcvt.s32.f32 %v167
    %v176 = vcvt.s32.f32 %v168
    %v177 = vcvt.s32.f32 %v169
    %v178 = vcvt.s32.f32 %v170
    %v179 = vcvt.s32.f32 %v171
    %v180 = vcvt.s32.f32 %v172
    %v181 = vcvt.s32.f32 %v173
    %v182 = vadd.f32 %v150, 1.0
    %v183 = vadd.f32 %v151, 1.0
    %v184 = vadd.f32 %v152, 1.0
    %v185 = vadd.f32 %v153, 1.0
    %v186 = vadd.f32 %v154, 1.0
    %v187 = vadd.f32 %v155, 1.0
    %v188 = vadd.f32 %v156, 1.0
    %v189 = vadd.f32 %v157, 1.0
    %v190 = vmul.f32 %v182, 1.1920929e-07
    %v191 = vmul.f32 %v183, 1.1920929e-07
    %v192 = vmul.f32 %v184, 1.1920929e-07
    %v193 = vmul.f32 %v185, 1.1920929e-07
    %v194 = vmul.f32 %v186, 1.1920929e-07
    %v195 = vmul.f32 %v187, 1.1920929e-07
    %v196 = vmul.f32 %v188, 1.1920929e-07
    %v197 = vmul.f32 %v189, 1.1920929e-07
    %v198 = vmul.f32 %v174, 7.490141e-07
    %v199 = vmul.f32 %v175, 7.490141e-07
    %v200 = vmul.f32 %v176, 7.490141e-07
    %v201 = vmul.f32 %v177, 7.490141e-07
    %v202 = vmul.f32 %v178, 7.490141e-07
    %v203 = vmul.f32 %v179, 7.490141e-07
    %v204 = vmul.f32 %v180, 7.490141e-07
    %v205 = vmul.f32 %v181, 7.490141e-07
    %v206 = vlog2.pop %v190
    %v207 = vmul.f32 %v206, 0.6931472
    %v208 = vlog2.pop %v191
    %v209 = vmul.f32 %v208, 0.6931472
    %v210 = vlog2.pop %v192
    %v211 = vmul.f32 %v210, 0.6931472
    %v212 = vlog2.pop %v193
    %v213 = vmul.f32 %v212, 0.6931472
    %v214 = vlog2.pop %v194
    %v215 = vmul.f32 %v214, 0.6931472
    %v216 = vlog2.pop %v195
    %v217 = vmul.f32 %v216, 0.6931472
    %v218 = vlog2.pop %v196
    %v219 = vmul.f32 %v218, 0.6931472
    %v220 = vlog2.pop %v197
    %v221 = vmul.f32 %v220, 0.6931472
    %v222 = vmul.f32 %v207, -2.0
    %v223 = vmul.f32 %v209, -2.0
    %v224 = vmul.f32 %v211, -2.0
    %v225 = vmul.f32 %v213, -2.0
    %v226 = vmul.f32 %v215, -2.0
    %v227 = vmul.f32 %v217, -2.0
    %v228 = vmul.f32 %v219, -2.0
    %v229 = vmul.f32 %v221, -2.0
    %v230 = vrsqrt.pop %v222
    %v231 = vmul.f32 %v230, %v222
    %v232 = vmul.f32 %v231, %v230
    %v233 = vmul.f32 0.5, %v232
    %v234 = vsub.f32 1.5, %v233
    %v235 = vmul.f32 %v230, %v234
    %v236 = vmul.f32 %v222, %v235
    %vm237 = vcmp.eq.f32.partialorder %v222, inf
    %v238 = vsel %vm237, %v222, %v236
    %vm239 = vcmp.eq.f32.partialorder %v222, 0.0
    %v240 = vand.u32 %v222, 2147483648
    %v241 = vsel %vm239, %v240, %v238
    %v242 = vrsqrt.pop %v223
    %v243 = vmul.f32 %v242, %v223
    %v244 = vmul.f32 %v243, %v242
    %v245 = vmul.f32 0.5, %v244
    %v246 = vsub.f32 1.5, %v245
    %v247 = vmul.f32 %v242, %v246
    %v248 = vmul.f32 %v223, %v247
    %vm249 = vcmp.eq.f32.partialorder %v223, inf
    %v250 = vsel %vm249, %v223, %v248
    %vm251 = vcmp.eq.f32.partialorder %v223, 0.0
    %v252 = vand.u32 %v223, 2147483648
    %v253 = vsel %vm251, %v252, %v250
    %v254 = vrsqrt.pop %v224
    %v255 = vmul.f32 %v254, %v224
    %v256 = vmul.f32 %v255, %v254
    %v257 = vmul.f32 0.5, %v256
    %v258 = vsub.f32 1.5, %v257
    %v259 = vmul.f32 %v254, %v258
    %v260 = vmul.f32 %v224, %v259
    %vm261 = vcmp.eq.f32.partialorder %v224, inf
    %v262 = vsel %vm261, %v224, %v260
    %vm263 = vcmp.eq.f32.partialorder %v224, 0.0
    %v264 = vand.u32 %v224, 2147483648
    %v265 = vsel %vm263, %v264, %v262
    %v266 = vrsqrt.pop %v225
    %v267 = vmul.f32 %v266, %v225
    %v268 = vmul.f32 %v267, %v266
    %v269 = vmul.f32 0.5, %v268
    %v270 = vsub.f32 1.5, %v269
    %v271 = vmul.f32 %v266, %v270
    %v272 = vmul.f32 %v225, %v271
    %vm273 = vcmp.eq.f32.partialorder %v225, inf
    %v274 = vsel %vm273, %v225, %v272
    %vm275 = vcmp.eq.f32.partialorder %v225, 0.0
    %v276 = vand.u32 %v225, 2147483648
    %v277 = vsel %vm275, %v276, %v274
    %v278 = vrsqrt.pop %v226
    %v279 = vmul.f32 %v278, %v226
    %v280 = vmul.f32 %v279, %v278
    %v281 = vmul.f32 0.5, %v280
    %v282 = vsub.f32 1.5, %v281
    %v283 = vmul.f32 %v278, %v282
    %v284 = vmul.f32 %v226, %v283
    %vm285 = vcmp.eq.f32.partialorder %v226, inf
    %v286 = vsel %vm285, %v226, %v284
    %vm287 = vcmp.eq.f32.partialorder %v226, 0.0
    %v288 = vand.u32 %v226, 2147483648
    %v289 = vsel %vm287, %v288, %v286
    %v290 = vrsqrt.pop %v227
    %v291 = vmul.f32 %v290, %v227
    %v292 = vmul.f32 %v291, %v290
    %v293 = vmul.f32 0.5, %v292
    %v294 = vsub.f32 1.5, %v293
    %v295 = vmul.f32 %v290, %v294
    %v296 = vmul.f32 %v227, %v295
    %vm297 = vcmp.eq.f32.partialorder %v227, inf
    %v298 = vsel %vm297, %v227, %v296
    %vm299 = vcmp.eq.f32.partialorder %v227, 0.0
    %v300 = vand.u32 %v227, 2147483648
    %v301 = vsel %vm299, %v300, %v298
    %v302 = vrsqrt.pop %v228
    %v303 = vmul.f32 %v302, %v228
    %v304 = vmul.f32 %v303, %v302
    %v305 = vmul.f32 0.5, %v304
    %v306 = vsub.f32 1.5, %v305
    %v307 = vmul.f32 %v302, %v306
    %v308 = vmul.f32 %v228, %v307
    %vm309 = vcmp.eq.f32.partialorder %v228, inf
    %v310 = vsel %vm309, %v228, %v308
    %vm311 = vcmp.eq.f32.partialorder %v228, 0.0
    %v312 = vand.u32 %v228, 2147483648
    %v313 = vsel %vm311, %v312, %v310
    %v314 = vrsqrt.pop %v229
    %v315 = vmul.f32 %v314, %v229
    %v316 = vmul.f32 %v315, %v314
    %v317 = vmul.f32 0.5, %v316
    %v318 = vsub.f32 1.5, %v317
    %v319 = vmul.f32 %v314, %v318
    %v320 = vmul.f32 %v229, %v319
    %vm321 = vcmp.eq.f32.partialorder %v229, inf
    %v322 = vsel %vm321, %v229, %v320
    %vm323 = vcmp.eq.f32.partialorder %v229, 0.0
    %v324 = vand.u32 %v229, 2147483648
    %v325 = vsel %vm323, %v324, %v322
    %v326 = vand.u32 2147483647, %v198
    %vm327 = vcmp.le.f32.partialorder %v326, 0.7853982
    %vm328 = vcmp.lt.s32.totalorder %v198, 0
    %v329 = vand.u32 %v198, 2139095040
    %v330 = vshrl.u32 %v329, 23
    %v331 = vsub.s32 %v330, 127
    %v332 = vand.u32 2147483647, %v198
    %v333 = vand.u32 %v332, 8388607
    %v334 = vor.u32 %v333, 8388608
    %v335 = vsub.s32 0, %v334
    %v336 = vadd.s32 %v331, 1
    %vm337 = vcmp.gt.s32.totalorder %v336, 0
    %v338 = vsel %vm337, %v336, 0
    %v339 = vshrl.u32 %v338, 5
    %v340 = vand.u32 %v338, 31
    %v341 = vsub.s32 32, %v340
    %v342 = vshrl.u32 683565275, %v341
    %v343 = vshll.u32 683565275, %v340
    %v344 = vshrl.u32 2475754826, %v341
    %v345 = vor.u32 %v343, %v344
    %v346 = vshll.u32 2475754826, %v340
    %v347 = vshrl.u32 2131351028, %v341
    %v348 = vor.u32 %v346, %v347
    %v349 = vshll.u32 2131351028, %v340
    %v350 = vshrl.u32 2102212464, %v341
    %v351 = vor.u32 %v349, %v350
    %v352 = vshll.u32 2102212464, %v340
    %v353 = vshrl.u32 920167782, %v341
    %v354 = vor.u32 %v352, %v353
    %v355 = vshll.u32 920167782, %v340
    %v356 = vshrl.u32 1326507024, %v341
    %v357 = vor.u32 %v355, %v356
    %vm358 = vcmp.lt.s32.totalorder %v339, 1
    %vm359 = vcmp.lt.s32.totalorder %v339, 2
    %vm360 = vcmp.lt.s32.totalorder %v339, 3
    %vm361 = vcmp.lt.s32.totalorder %v339, 4
    %v362 = vsel %vm358, %v342, %v345
    %v363 = vsel %vm361, %v351, 2102212464
    %v364 = vsel %vm360, %v348, %v363
    %v365 = vsel %vm359, %v362, %v364
    %v366 = vsel %vm358, %v345, %v348
    %v367 = vsel %vm361, %v354, 920167782
    %v368 = vsel %vm360, %v351, %v367
    %v369 = vsel %vm359, %v366, %v368
    %v370 = vsel %vm358, %v348, %v351
    %v371 = vsel %vm361, %v357, 1326507024
    %v372 = vsel %vm360, %v354, %v371
    %v373 = vsel %vm359, %v370, %v372
    %v374 = vshll.u32 %v334, 8
    %v375 = vand.u32 %v374, 65535
    %v376 = vshrl.u32 %v374, 16
    %v377 = vand.u32 %v373, 65535
    %v378 = vshrl.u32 %v373, 16
    %v379 = vmul.u32 %v375, %v377
    %v380 = vmul.u32 %v375, %v378
    %v381 = vmul.u32 %v376, %v377
    %v382 = vmul.u32 %v376, %v378
    %v383 = vshll.u32 %v380, 16
    %v384 = vshrl.u32 %v380, 16
    %v385 = vshll.u32 %v381, 16
    %v386 = vshrl.u32 %v381, 16
    %vm387 = vc.u32 %v379, %v383
    %v388 = vsel %vm387, 1, 0
    %v389 = vadd.s32 %v379, %v383
    %v390 = vadd.s32 %v382, %v388
    %vm391 = vc.u32 %v389, %v385
    %v392 = vsel %vm391, 1, 0
    %v393 = vadd.s32 %v389, %v385
    %v394 = vadd.s32 %v390, %v392
    %v395 = vadd.s32 %v394, %v384
    %v396 = vadd.s32 %v395, %v386
    %v397 = vand.u32 %v374, 65535
    %v398 = vshrl.u32 %v374, 16
    %v399 = vand.u32 %v369, 65535
    %v400 = vshrl.u32 %v369, 16
    %v401 = vmul.u32 %v397, %v399
    %v402 = vmul.u32 %v397, %v400
    %v403 = vmul.u32 %v398, %v399
    %v404 = vmul.u32 %v398, %v400
    %v405 = vshll.u32 %v402, 16
    %v406 = vshrl.u32 %v402, 16
    %v407 = vshll.u32 %v403, 16
    %v408 = vshrl.u32 %v403, 16
    %vm409 = vc.u32 %v401, %v405
    %v410 = vsel %vm409, 1, 0
    %v411 = vadd.s32 %v401, %v405
    %v412 = vadd.s32 %v404, %v410
    %vm413 = vc.u32 %v411, %v407
    %v414 = vsel %vm413, 1, 0
    %v415 = vadd.s32 %v411, %v407
    %v416 = vadd.s32 %v412, %v414
    %v417 = vadd.s32 %v416, %v406
    %v418 = vadd.s32 %v417, %v408
    %v419 = vmul.u32 %v374, %v365
    %v420 = vadd.s32 %v396, %v415
    %vm421 = vc.u32 %v396, %v415
    %v422 = vadd.s32 %v418, 1
    %v423 = vsel %vm421, %v422, %v418
    %v424 = vadd.s32 %v419, %v423
    %v425 = vadd.s32 %v424, 536870912
    %v426 = vshrl.u32 %v425, 30
    %v427 = vshll.u32 %v426, 30
    %v428 = vsub.s32 %v424, %v427
    %vm429 = vcmp.lt.s32.totalorder %v428, 0
    %v430 = vsub.s32 0, %v428
    %v431 = vsel %vm429, %v430, %v428
    %v432 = vclz %v431
    %v433 = vsub.s32 %v432, 2
    %vm434 = vcmp.gt.s32.totalorder 0, %v433
    %v435 = vsel %vm434, 0, %v433
    %v436 = vsub.s32 32, %v435
    %v437 = vshll.u32 %v428, %v435
    %v438 = vshrl.u32 %v420, %v436
    %v439 = vor.u32 %v437, %v438
    %v440 = vsub.s32 4294967266, %v435
    %v441 = vadd.s32 %v440, 127
    %v442 = vshll.u32 %v441, 23
    %v443 = vor.u32 4788187, %v442
    %v444 = vand.u32 2147483647, %v443
    %v446 = vcvt.s32.f32 %v439
    %v447 = vmul.f32 %v446, %v444
    %v448 = vxor.u32 %v447, 2147483648
    %v449 = vsel %vm328, %v448, %v447
    %v450 = vsub.s32 4, %v426
    %v451 = vsel %vm328, %v450, %v426
    %v452 = vsel %vm327, %v198, %v449
    %v453 = vsel %vm327, 0, %v451
    %v454 = vmul.f32 %v452, %v452
    %v455 = vmul.f32 %v454, -0.001358992
    %v456 = vadd.f32 %v455, 0.041655596
    %v457 = vmul.f32 %v454, %v456
    %v458 = vadd.f32 %v457, -0.4999988
    %v459 = vmul.f32 %v454, %v458
    %v460 = vadd.f32 1.0, %v459
    %v461 = vmul.f32 %v452, %v452
    %v462 = vmul.f32 %v461, -0.00019511016
    %v463 = vadd.f32 %v462, 0.008332121
    %v464 = vmul.f32 %v461, %v463
    %v465 = vadd.f32 %v464, -0.16666654
    %v466 = vmul.f32 %v461, %v465
    %v467 = vadd.f32 %v466, 1.0
    %v468 = vmul.f32 %v467, %v452
    %vm469 = vweird.f32 %v198
    %v470 = vand.u32 %v453, 3
    %vm471 = vcmp.lt.s32.totalorder %v470, 2
    %vm472 = vcmp.eq.s32.totalorder %v470, 0
    %v473 = vxor.u32 %v468, 2147483648
    %v474 = vsel %vm472, %v460, %v473
    %vm475 = vcmp.eq.s32.totalorder %v470, 2
    %v476 = vxor.u32 %v460, 2147483648
    %v477 = vsel %vm475, %v476, %v468
    %v478 = vsel %vm471, %v474, %v477
    %v479 = vsel %vm469, nan, %v478
    %v480 = vand.u32 2147483647, %v199
    %vm481 = vcmp.le.f32.partialorder %v480, 0.7853982
    %vm482 = vcmp.lt.s32.totalorder %v199, 0
    %v483 = vand.u32 %v199, 2139095040
    %v484 = vshrl.u32 %v483, 23
    %v485 = vsub.s32 %v484, 127
    %v486 = vand.u32 2147483647, %v199
    %v487 = vand.u32 %v486, 8388607
    %v488 = vor.u32 %v487, 8388608
    %v489 = vsub.s32 0, %v488
    %v490 = vadd.s32 %v485, 1
    %vm491 = vcmp.gt.s32.totalorder %v490, 0
    %v492 = vsel %vm491, %v490, 0
    %v493 = vshrl.u32 %v492, 5
    %v494 = vand.u32 %v492, 31
    %v495 = vsub.s32 32, %v494
    %v496 = vshrl.u32 683565275, %v495
    %v497 = vshll.u32 683565275, %v494
    %v498 = vshrl.u32 2475754826, %v495
    %v499 = vor.u32 %v497, %v498
    %v500 = vshll.u32 2475754826, %v494
    %v501 = vshrl.u32 2131351028, %v495
    %v502 = vor.u32 %v500, %v501
    %v503 = vshll.u32 2131351028, %v494
    %v504 = vshrl.u32 2102212464, %v495
    %v505 = vor.u32 %v503, %v504
    %v506 = vshll.u32 2102212464, %v494
    %v507 = vshrl.u32 920167782, %v495
    %v508 = vor.u32 %v506, %v507
    %v509 = vshll.u32 920167782, %v494
    %v510 = vshrl.u32 1326507024, %v495
    %v511 = vor.u32 %v509, %v510
    %vm512 = vcmp.lt.s32.totalorder %v493, 1
    %vm513 = vcmp.lt.s32.totalorder %v493, 2
    %vm514 = vcmp.lt.s32.totalorder %v493, 3
    %vm515 = vcmp.lt.s32.totalorder %v493, 4
    %v516 = vsel %vm512, %v496, %v499
    %v517 = vsel %vm515, %v505, 2102212464
    %v518 = vsel %vm514, %v502, %v517
    %v519 = vsel %vm513, %v516, %v518
    %v520 = vsel %vm512, %v499, %v502
    %v521 = vsel %vm515, %v508, 920167782
    %v522 = vsel %vm514, %v505, %v521
    %v523 = vsel %vm513, %v520, %v522
    %v524 = vsel %vm512, %v502, %v505
    %v525 = vsel %vm515, %v511, 1326507024
    %v526 = vsel %vm514, %v508, %v525
    %v527 = vsel %vm513, %v524, %v526
    %v528 = vshll.u32 %v488, 8
    %v529 = vand.u32 %v528, 65535
    %v530 = vshrl.u32 %v528, 16
    %v531 = vand.u32 %v527, 65535
    %v532 = vshrl.u32 %v527, 16
    %v533 = vmul.u32 %v529, %v531
    %v534 = vmul.u32 %v529, %v532
    %v535 = vmul.u32 %v530, %v531
    %v536 = vmul.u32 %v530, %v532
    %v537 = vshll.u32 %v534, 16
    %v538 = vshrl.u32 %v534, 16
    %v539 = vshll.u32 %v535, 16
    %v540 = vshrl.u32 %v535, 16
    %vm541 = vc.u32 %v533, %v537
    %v542 = vsel %vm541, 1, 0
    %v543 = vadd.s32 %v533, %v537
    %v544 = vadd.s32 %v536, %v542
    %vm545 = vc.u32 %v543, %v539
    %v546 = vsel %vm545, 1, 0
    %v547 = vadd.s32 %v543, %v539
    %v548 = vadd.s32 %v544, %v546
    %v549 = vadd.s32 %v548, %v538
    %v550 = vadd.s32 %v549, %v540
    %v551 = vand.u32 %v528, 65535
    %v552 = vshrl.u32 %v528, 16
    %v553 = vand.u32 %v523, 65535
    %v554 = vshrl.u32 %v523, 16
    %v555 = vmul.u32 %v551, %v553
    %v556 = vmul.u32 %v551, %v554
    %v557 = vmul.u32 %v552, %v553
    %v558 = vmul.u32 %v552, %v554
    %v559 = vshll.u32 %v556, 16
    %v560 = vshrl.u32 %v556, 16
    %v561 = vshll.u32 %v557, 16
    %v562 = vshrl.u32 %v557, 16
    %vm563 = vc.u32 %v555, %v559
    %v564 = vsel %vm563, 1, 0
    %v565 = vadd.s32 %v555, %v559
    %v566 = vadd.s32 %v558, %v564
    %vm567 = vc.u32 %v565, %v561
    %v568 = vsel %vm567, 1, 0
    %v569 = vadd.s32 %v565, %v561
    %v570 = vadd.s32 %v566, %v568
    %v571 = vadd.s32 %v570, %v560
    %v572 = vadd.s32 %v571, %v562
    %v573 = vmul.u32 %v528, %v519
    %v574 = vadd.s32 %v550, %v569
    %vm575 = vc.u32 %v550, %v569
    %v576 = vadd.s32 %v572, 1
    %v577 = vsel %vm575, %v576, %v572
    %v578 = vadd.s32 %v573, %v577
    %v579 = vadd.s32 %v578, 536870912
    %v580 = vshrl.u32 %v579, 30
    %v581 = vshll.u32 %v580, 30
    %v582 = vsub.s32 %v578, %v581
    %vm583 = vcmp.lt.s32.totalorder %v582, 0
    %v584 = vsub.s32 0, %v582
    %v585 = vsel %vm583, %v584, %v582
    %v586 = vclz %v585
    %v587 = vsub.s32 %v586, 2
    %vm588 = vcmp.gt.s32.totalorder 0, %v587
    %v589 = vsel %vm588, 0, %v587
    %v590 = vsub.s32 32, %v589
    %v591 = vshll.u32 %v582, %v589
    %v592 = vshrl.u32 %v574, %v590
    %v593 = vor.u32 %v591, %v592
    %v594 = vsub.s32 4294967266, %v589
    %v595 = vadd.s32 %v594, 127
    %v596 = vshll.u32 %v595, 23
    %v597 = vor.u32 4788187, %v596
    %v598 = vand.u32 2147483647, %v597
    %v600 = vcvt.s32.f32 %v593
    %v601 = vmul.f32 %v600, %v598
    %v602 = vxor.u32 %v601, 2147483648
    %v603 = vsel %vm482, %v602, %v601
    %v604 = vsub.s32 4, %v580
    %v605 = vsel %vm482, %v604, %v580
    %v606 = vsel %vm481, %v199, %v603
    %v607 = vsel %vm481, 0, %v605
    %v608 = vmul.f32 %v606, %v606
    %v609 = vmul.f32 %v608, -0.001358992
    %v610 = vadd.f32 %v609, 0.041655596
    %v611 = vmul.f32 %v608, %v610
    %v612 = vadd.f32 %v611, -0.4999988
    %v613 = vmul.f32 %v608, %v612
    %v614 = vadd.f32 1.0, %v613
    %v615 = vmul.f32 %v606, %v606
    %v616 = vmul.f32 %v615, -0.00019511016
    %v617 = vadd.f32 %v616, 0.008332121
    %v618 = vmul.f32 %v615, %v617
    %v619 = vadd.f32 %v618, -0.16666654
    %v620 = vmul.f32 %v615, %v619
    %v621 = vadd.f32 %v620, 1.0
    %v622 = vmul.f32 %v621, %v606
    %vm623 = vweird.f32 %v199
    %v624 = vand.u32 %v607, 3
    %vm625 = vcmp.lt.s32.totalorder %v624, 2
    %vm626 = vcmp.eq.s32.totalorder %v624, 0
    %v627 = vxor.u32 %v622, 2147483648
    %v628 = vsel %vm626, %v614, %v627
    %vm629 = vcmp.eq.s32.totalorder %v624, 2
    %v630 = vxor.u32 %v614, 2147483648
    %v631 = vsel %vm629, %v630, %v622
    %v632 = vsel %vm625, %v628, %v631
    %v633 = vsel %vm623, nan, %v632
    %v634 = vand.u32 2147483647, %v200
    %vm635 = vcmp.le.f32.partialorder %v634, 0.7853982
    %vm636 = vcmp.lt.s32.totalorder %v200, 0
    %v637 = vand.u32 %v200, 2139095040
    %v638 = vshrl.u32 %v637, 23
    %v639 = vsub.s32 %v638, 127
    %v640 = vand.u32 2147483647, %v200
    %v641 = vand.u32 %v640, 8388607
    %v642 = vor.u32 %v641, 8388608
    %v643 = vsub.s32 0, %v642
    %v644 = vadd.s32 %v639, 1
    %vm645 = vcmp.gt.s32.totalorder %v644, 0
    %v646 = vsel %vm645, %v644, 0
    %v647 = vshrl.u32 %v646, 5
    %v648 = vand.u32 %v646, 31
    %v649 = vsub.s32 32, %v648
    %v650 = vshrl.u32 683565275, %v649
    %v651 = vshll.u32 683565275, %v648
    %v652 = vshrl.u32 2475754826, %v649
    %v653 = vor.u32 %v651, %v652
    %v654 = vshll.u32 2475754826, %v648
    %v655 = vshrl.u32 2131351028, %v649
    %v656 = vor.u32 %v654, %v655
    %v657 = vshll.u32 2131351028, %v648
    %v658 = vshrl.u32 2102212464, %v649
    %v659 = vor.u32 %v657, %v658
    %v660 = vshll.u32 2102212464, %v648
    %v661 = vshrl.u32 920167782, %v649
    %v662 = vor.u32 %v660, %v661
    %v663 = vshll.u32 920167782, %v648
    %v664 = vshrl.u32 1326507024, %v649
    %v665 = vor.u32 %v663, %v664
    %vm666 = vcmp.lt.s32.totalorder %v647, 1
    %vm667 = vcmp.lt.s32.totalorder %v647, 2
    %vm668 = vcmp.lt.s32.totalorder %v647, 3
    %vm669 = vcmp.lt.s32.totalorder %v647, 4
    %v670 = vsel %vm666, %v650, %v653
    %v671 = vsel %vm669, %v659, 2102212464
    %v672 = vsel %vm668, %v656, %v671
    %v673 = vsel %vm667, %v670, %v672
    %v674 = vsel %vm666, %v653, %v656
    %v675 = vsel %vm669, %v662, 920167782
    %v676 = vsel %vm668, %v659, %v675
    %v677 = vsel %vm667, %v674, %v676
    %v678 = vsel %vm666, %v656, %v659
    %v679 = vsel %vm669, %v665, 1326507024
    %v680 = vsel %vm668, %v662, %v679
    %v681 = vsel %vm667, %v678, %v680
    %v682 = vshll.u32 %v642, 8
    %v683 = vand.u32 %v682, 65535
    %v684 = vshrl.u32 %v682, 16
    %v685 = vand.u32 %v681, 65535
    %v686 = vshrl.u32 %v681, 16
    %v687 = vmul.u32 %v683, %v685
    %v688 = vmul.u32 %v683, %v686
    %v689 = vmul.u32 %v684, %v685
    %v690 = vmul.u32 %v684, %v686
    %v691 = vshll.u32 %v688, 16
    %v692 = vshrl.u32 %v688, 16
    %v693 = vshll.u32 %v689, 16
    %v694 = vshrl.u32 %v689, 16
    %vm695 = vc.u32 %v687, %v691
    %v696 = vsel %vm695, 1, 0
    %v697 = vadd.s32 %v687, %v691
    %v698 = vadd.s32 %v690, %v696
    %vm699 = vc.u32 %v697, %v693
    %v700 = vsel %vm699, 1, 0
    %v701 = vadd.s32 %v697, %v693
    %v702 = vadd.s32 %v698, %v700
    %v703 = vadd.s32 %v702, %v692
    %v704 = vadd.s32 %v703, %v694
    %v705 = vand.u32 %v682, 65535
    %v706 = vshrl.u32 %v682, 16
    %v707 = vand.u32 %v677, 65535
    %v708 = vshrl.u32 %v677, 16
    %v709 = vmul.u32 %v705, %v707
    %v710 = vmul.u32 %v705, %v708
    %v711 = vmul.u32 %v706, %v707
    %v712 = vmul.u32 %v706, %v708
    %v713 = vshll.u32 %v710, 16
    %v714 = vshrl.u32 %v710, 16
    %v715 = vshll.u32 %v711, 16
    %v716 = vshrl.u32 %v711, 16
    %vm717 = vc.u32 %v709, %v713
    %v718 = vsel %vm717, 1, 0
    %v719 = vadd.s32 %v709, %v713
    %v720 = vadd.s32 %v712, %v718
    %vm721 = vc.u32 %v719, %v715
    %v722 = vsel %vm721, 1, 0
    %v723 = vadd.s32 %v719, %v715
    %v724 = vadd.s32 %v720, %v722
    %v725 = vadd.s32 %v724, %v714
    %v726 = vadd.s32 %v725, %v716
    %v727 = vmul.u32 %v682, %v673
    %v728 = vadd.s32 %v704, %v723
    %vm729 = vc.u32 %v704, %v723
    %v730 = vadd.s32 %v726, 1
    %v731 = vsel %vm729, %v730, %v726
    %v732 = vadd.s32 %v727, %v731
    %v733 = vadd.s32 %v732, 536870912
    %v734 = vshrl.u32 %v733, 30
    %v735 = vshll.u32 %v734, 30
    %v736 = vsub.s32 %v732, %v735
    %vm737 = vcmp.lt.s32.totalorder %v736, 0
    %v738 = vsub.s32 0, %v736
    %v739 = vsel %vm737, %v738, %v736
    %v740 = vclz %v739
    %v741 = vsub.s32 %v740, 2
    %vm742 = vcmp.gt.s32.totalorder 0, %v741
    %v743 = vsel %vm742, 0, %v741
    %v744 = vsub.s32 32, %v743
    %v745 = vshll.u32 %v736, %v743
    %v746 = vshrl.u32 %v728, %v744
    %v747 = vor.u32 %v745, %v746
    %v748 = vsub.s32 4294967266, %v743
    %v749 = vadd.s32 %v748, 127
    %v750 = vshll.u32 %v749, 23
    %v751 = vor.u32 4788187, %v750
    %v752 = vand.u32 2147483647, %v751
    %v754 = vcvt.s32.f32 %v747
    %v755 = vmul.f32 %v754, %v752
    %v756 = vxor.u32 %v755, 2147483648
    %v757 = vsel %vm636, %v756, %v755
    %v758 = vsub.s32 4, %v734
    %v759 = vsel %vm636, %v758, %v734
    %v760 = vsel %vm635, %v200, %v757
    %v761 = vsel %vm635, 0, %v759
    %v762 = vmul.f32 %v760, %v760
    %v763 = vmul.f32 %v762, -0.001358992
    %v764 = vadd.f32 %v763, 0.041655596
    %v765 = vmul.f32 %v762, %v764
    %v766 = vadd.f32 %v765, -0.4999988
    %v767 = vmul.f32 %v762, %v766
    %v768 = vadd.f32 1.0, %v767
    %v769 = vmul.f32 %v760, %v760
    %v770 = vmul.f32 %v769, -0.00019511016
    %v771 = vadd.f32 %v770, 0.008332121
    %v772 = vmul.f32 %v769, %v771
    %v773 = vadd.f32 %v772, -0.16666654
    %v774 = vmul.f32 %v769, %v773
    %v775 = vadd.f32 %v774, 1.0
    %v776 = vmul.f32 %v775, %v760
    %vm777 = vweird.f32 %v200
    %v778 = vand.u32 %v761, 3
    %vm779 = vcmp.lt.s32.totalorder %v778, 2
    %vm780 = vcmp.eq.s32.totalorder %v778, 0
    %v781 = vxor.u32 %v776, 2147483648
    %v782 = vsel %vm780, %v768, %v781
    %vm783 = vcmp.eq.s32.totalorder %v778, 2
    %v784 = vxor.u32 %v768, 2147483648
    %v785 = vsel %vm783, %v784, %v776
    %v786 = vsel %vm779, %v782, %v785
    %v787 = vsel %vm777, nan, %v786
    %v788 = vand.u32 2147483647, %v201
    %vm789 = vcmp.le.f32.partialorder %v788, 0.7853982
    %vm790 = vcmp.lt.s32.totalorder %v201, 0
    %v791 = vand.u32 %v201, 2139095040
    %v792 = vshrl.u32 %v791, 23
    %v793 = vsub.s32 %v792, 127
    %v794 = vand.u32 2147483647, %v201
    %v795 = vand.u32 %v794, 8388607
    %v796 = vor.u32 %v795, 8388608
    %v797 = vsub.s32 0, %v796
    %v798 = vadd.s32 %v793, 1
    %vm799 = vcmp.gt.s32.totalorder %v798, 0
    %v800 = vsel %vm799, %v798, 0
    %v801 = vshrl.u32 %v800, 5
    %v802 = vand.u32 %v800, 31
    %v803 = vsub.s32 32, %v802
    %v804 = vshrl.u32 683565275, %v803
    %v805 = vshll.u32 683565275, %v802
    %v806 = vshrl.u32 2475754826, %v803
    %v807 = vor.u32 %v805, %v806
    %v808 = vshll.u32 2475754826, %v802
    %v809 = vshrl.u32 2131351028, %v803
    %v810 = vor.u32 %v808, %v809
    %v811 = vshll.u32 2131351028, %v802
    %v812 = vshrl.u32 2102212464, %v803
    %v813 = vor.u32 %v811, %v812
    %v814 = vshll.u32 2102212464, %v802
    %v815 = vshrl.u32 920167782, %v803
    %v816 = vor.u32 %v814, %v815
    %v817 = vshll.u32 920167782, %v802
    %v818 = vshrl.u32 1326507024, %v803
    %v819 = vor.u32 %v817, %v818
    %vm820 = vcmp.lt.s32.totalorder %v801, 1
    %vm821 = vcmp.lt.s32.totalorder %v801, 2
    %vm822 = vcmp.lt.s32.totalorder %v801, 3
    %vm823 = vcmp.lt.s32.totalorder %v801, 4
    %v824 = vsel %vm820, %v804, %v807
    %v825 = vsel %vm823, %v813, 2102212464
    %v826 = vsel %vm822, %v810, %v825
    %v827 = vsel %vm821, %v824, %v826
    %v828 = vsel %vm820, %v807, %v810
    %v829 = vsel %vm823, %v816, 920167782
    %v830 = vsel %vm822, %v813, %v829
    %v831 = vsel %vm821, %v828, %v830
    %v832 = vsel %vm820, %v810, %v813
    %v833 = vsel %vm823, %v819, 1326507024
    %v834 = vsel %vm822, %v816, %v833
    %v835 = vsel %vm821, %v832, %v834
    %v836 = vshll.u32 %v796, 8
    %v837 = vand.u32 %v836, 65535
    %v838 = vshrl.u32 %v836, 16
    %v839 = vand.u32 %v835, 65535
    %v840 = vshrl.u32 %v835, 16
    %v841 = vmul.u32 %v837, %v839
    %v842 = vmul.u32 %v837, %v840
    %v843 = vmul.u32 %v838, %v839
    %v844 = vmul.u32 %v838, %v840
    %v845 = vshll.u32 %v842, 16
    %v846 = vshrl.u32 %v842, 16
    %v847 = vshll.u32 %v843, 16
    %v848 = vshrl.u32 %v843, 16
    %vm849 = vc.u32 %v841, %v845
    %v850 = vsel %vm849, 1, 0
    %v851 = vadd.s32 %v841, %v845
    %v852 = vadd.s32 %v844, %v850
    %vm853 = vc.u32 %v851, %v847
    %v854 = vsel %vm853, 1, 0
    %v855 = vadd.s32 %v851, %v847
    %v856 = vadd.s32 %v852, %v854
    %v857 = vadd.s32 %v856, %v846
    %v858 = vadd.s32 %v857, %v848
    %v859 = vand.u32 %v836, 65535
    %v860 = vshrl.u32 %v836, 16
    %v861 = vand.u32 %v831, 65535
    %v862 = vshrl.u32 %v831, 16
    %v863 = vmul.u32 %v859, %v861
    %v864 = vmul.u32 %v859, %v862
    %v865 = vmul.u32 %v860, %v861
    %v866 = vmul.u32 %v860, %v862
    %v867 = vshll.u32 %v864, 16
    %v868 = vshrl.u32 %v864, 16
    %v869 = vshll.u32 %v865, 16
    %v870 = vshrl.u32 %v865, 16
    %vm871 = vc.u32 %v863, %v867
    %v872 = vsel %vm871, 1, 0
    %v873 = vadd.s32 %v863, %v867
    %v874 = vadd.s32 %v866, %v872
    %vm875 = vc.u32 %v873, %v869
    %v876 = vsel %vm875, 1, 0
    %v877 = vadd.s32 %v873, %v869
    %v878 = vadd.s32 %v874, %v876
    %v879 = vadd.s32 %v878, %v868
    %v880 = vadd.s32 %v879, %v870
    %v881 = vmul.u32 %v836, %v827
    %v882 = vadd.s32 %v858, %v877
    %vm883 = vc.u32 %v858, %v877
    %v884 = vadd.s32 %v880, 1
    %v885 = vsel %vm883, %v884, %v880
    %v886 = vadd.s32 %v881, %v885
    %v887 = vadd.s32 %v886, 536870912
    %v888 = vshrl.u32 %v887, 30
    %v889 = vshll.u32 %v888, 30
    %v890 = vsub.s32 %v886, %v889
    %vm891 = vcmp.lt.s32.totalorder %v890, 0
    %v892 = vsub.s32 0, %v890
    %v893 = vsel %vm891, %v892, %v890
    %v894 = vclz %v893
    %v895 = vsub.s32 %v894, 2
    %vm896 = vcmp.gt.s32.totalorder 0, %v895
    %v897 = vsel %vm896, 0, %v895
    %v898 = vsub.s32 32, %v897
    %v899 = vshll.u32 %v890, %v897
    %v900 = vshrl.u32 %v882, %v898
    %v901 = vor.u32 %v899, %v900
    %v902 = vsub.s32 4294967266, %v897
    %v903 = vadd.s32 %v902, 127
    %v904 = vshll.u32 %v903, 23
    %v905 = vor.u32 4788187, %v904
    %v906 = vand.u32 2147483647, %v905
    %v908 = vcvt.s32.f32 %v901
    %v909 = vmul.f32 %v908, %v906
    %v910 = vxor.u32 %v909, 2147483648
    %v911 = vsel %vm790, %v910, %v909
    %v912 = vsub.s32 4, %v888
    %v913 = vsel %vm790, %v912, %v888
    %v914 = vsel %vm789, %v201, %v911
    %v915 = vsel %vm789, 0, %v913
    %v916 = vmul.f32 %v914, %v914
    %v917 = vmul.f32 %v916, -0.001358992
    %v918 = vadd.f32 %v917, 0.041655596
    %v919 = vmul.f32 %v916, %v918
    %v920 = vadd.f32 %v919, -0.4999988
    %v921 = vmul.f32 %v916, %v920
    %v922 = vadd.f32 1.0, %v921
    %v923 = vmul.f32 %v914, %v914
    %v924 = vmul.f32 %v923, -0.00019511016
    %v925 = vadd.f32 %v924, 0.008332121
    %v926 = vmul.f32 %v923, %v925
    %v927 = vadd.f32 %v926, -0.16666654
    %v928 = vmul.f32 %v923, %v927
    %v929 = vadd.f32 %v928, 1.0
    %v930 = vmul.f32 %v929, %v914
    %vm931 = vweird.f32 %v201
    %v932 = vand.u32 %v915, 3
    %vm933 = vcmp.lt.s32.totalorder %v932, 2
    %vm934 = vcmp.eq.s32.totalorder %v932, 0
    %v935 = vxor.u32 %v930, 2147483648
    %v936 = vsel %vm934, %v922, %v935
    %vm937 = vcmp.eq.s32.totalorder %v932, 2
    %v938 = vxor.u32 %v922, 2147483648
    %v939 = vsel %vm937, %v938, %v930
    %v940 = vsel %vm933, %v936, %v939
    %v941 = vsel %vm931, nan, %v940
    %v942 = vand.u32 2147483647, %v202
    %vm943 = vcmp.le.f32.partialorder %v942, 0.7853982
    %vm944 = vcmp.lt.s32.totalorder %v202, 0
    %v945 = vand.u32 %v202, 2139095040
    %v946 = vshrl.u32 %v945, 23
    %v947 = vsub.s32 %v946, 127
    %v948 = vand.u32 2147483647, %v202
    %v949 = vand.u32 %v948, 8388607
    %v950 = vor.u32 %v949, 8388608
    %v951 = vsub.s32 0, %v950
    %v952 = vadd.s32 %v947, 1
    %vm953 = vcmp.gt.s32.totalorder %v952, 0
    %v954 = vsel %vm953, %v952, 0
    %v955 = vshrl.u32 %v954, 5
    %v956 = vand.u32 %v954, 31
    %v957 = vsub.s32 32, %v956
    %v958 = vshrl.u32 683565275, %v957
    %v959 = vshll.u32 683565275, %v956
    %v960 = vshrl.u32 2475754826, %v957
    %v961 = vor.u32 %v959, %v960
    %v962 = vshll.u32 2475754826, %v956
    %v963 = vshrl.u32 2131351028, %v957
    %v964 = vor.u32 %v962, %v963
    %v965 = vshll.u32 2131351028, %v956
    %v966 = vshrl.u32 2102212464, %v957
    %v967 = vor.u32 %v965, %v966
    %v968 = vshll.u32 2102212464, %v956
    %v969 = vshrl.u32 920167782, %v957
    %v970 = vor.u32 %v968, %v969
    %v971 = vshll.u32 920167782, %v956
    %v972 = vshrl.u32 1326507024, %v957
    %v973 = vor.u32 %v971, %v972
    %vm974 = vcmp.lt.s32.totalorder %v955, 1
    %vm975 = vcmp.lt.s32.totalorder %v955, 2
    %vm976 = vcmp.lt.s32.totalorder %v955, 3
    %vm977 = vcmp.lt.s32.totalorder %v955, 4
    %v978 = vsel %vm974, %v958, %v961
    %v979 = vsel %vm977, %v967, 2102212464
    %v980 = vsel %vm976, %v964, %v979
    %v981 = vsel %vm975, %v978, %v980
    %v982 = vsel %vm974, %v961, %v964
    %v983 = vsel %vm977, %v970, 920167782
    %v984 = vsel %vm976, %v967, %v983
    %v985 = vsel %vm975, %v982, %v984
    %v986 = vsel %vm974, %v964, %v967
    %v987 = vsel %vm977, %v973, 1326507024
    %v988 = vsel %vm976, %v970, %v987
    %v989 = vsel %vm975, %v986, %v988
    %v990 = vshll.u32 %v950, 8
    %v991 = vand.u32 %v990, 65535
    %v992 = vshrl.u32 %v990, 16
    %v993 = vand.u32 %v989, 65535
    %v994 = vshrl.u32 %v989, 16
    %v995 = vmul.u32 %v991, %v993
    %v996 = vmul.u32 %v991, %v994
    %v997 = vmul.u32 %v992, %v993
    %v998 = vmul.u32 %v992, %v994
    %v999 = vshll.u32 %v996, 16
    %v1000 = vshrl.u32 %v996, 16
    %v1001 = vshll.u32 %v997, 16
    %v1002 = vshrl.u32 %v997, 16
    %vm1003 = vc.u32 %v995, %v999
    %v1004 = vsel %vm1003, 1, 0
    %v1005 = vadd.s32 %v995, %v999
    %v1006 = vadd.s32 %v998, %v1004
    %vm1007 = vc.u32 %v1005, %v1001
    %v1008 = vsel %vm1007, 1, 0
    %v1009 = vadd.s32 %v1005, %v1001
    %v1010 = vadd.s32 %v1006, %v1008
    %v1011 = vadd.s32 %v1010, %v1000
    %v1012 = vadd.s32 %v1011, %v1002
    %v1013 = vand.u32 %v990, 65535
    %v1014 = vshrl.u32 %v990, 16
    %v1015 = vand.u32 %v985, 65535
    %v1016 = vshrl.u32 %v985, 16
    %v1017 = vmul.u32 %v1013, %v1015
    %v1018 = vmul.u32 %v1013, %v1016
    %v1019 = vmul.u32 %v1014, %v1015
    %v1020 = vmul.u32 %v1014, %v1016
    %v1021 = vshll.u32 %v1018, 16
    %v1022 = vshrl.u32 %v1018, 16
    %v1023 = vshll.u32 %v1019, 16
    %v1024 = vshrl.u32 %v1019, 16
    %vm1025 = vc.u32 %v1017, %v1021
    %v1026 = vsel %vm1025, 1, 0
    %v1027 = vadd.s32 %v1017, %v1021
    %v1028 = vadd.s32 %v1020, %v1026
    %vm1029 = vc.u32 %v1027, %v1023
    %v1030 = vsel %vm1029, 1, 0
    %v1031 = vadd.s32 %v1027, %v1023
    %v1032 = vadd.s32 %v1028, %v1030
    %v1033 = vadd.s32 %v1032, %v1022
    %v1034 = vadd.s32 %v1033, %v1024
    %v1035 = vmul.u32 %v990, %v981
    %v1036 = vadd.s32 %v1012, %v1031
    %vm1037 = vc.u32 %v1012, %v1031
    %v1038 = vadd.s32 %v1034, 1
    %v1039 = vsel %vm1037, %v1038, %v1034
    %v1040 = vadd.s32 %v1035, %v1039
    %v1041 = vadd.s32 %v1040, 536870912
    %v1042 = vshrl.u32 %v1041, 30
    %v1043 = vshll.u32 %v1042, 30
    %v1044 = vsub.s32 %v1040, %v1043
    %vm1045 = vcmp.lt.s32.totalorder %v1044, 0
    %v1046 = vsub.s32 0, %v1044
    %v1047 = vsel %vm1045, %v1046, %v1044
    %v1048 = vclz %v1047
    %v1049 = vsub.s32 %v1048, 2
    %vm1050 = vcmp.gt.s32.totalorder 0, %v1049
    %v1051 = vsel %vm1050, 0, %v1049
    %v1052 = vsub.s32 32, %v1051
    %v1053 = vshll.u32 %v1044, %v1051
    %v1054 = vshrl.u32 %v1036, %v1052
    %v1055 = vor.u32 %v1053, %v1054
    %v1056 = vsub.s32 4294967266, %v1051
    %v1057 = vadd.s32 %v1056, 127
    %v1058 = vshll.u32 %v1057, 23
    %v1059 = vor.u32 4788187, %v1058
    %v1060 = vand.u32 2147483647, %v1059
    %v1062 = vcvt.s32.f32 %v1055
    %v1063 = vmul.f32 %v1062, %v1060
    %v1064 = vxor.u32 %v1063, 2147483648
    %v1065 = vsel %vm944, %v1064, %v1063
    %v1066 = vsub.s32 4, %v1042
    %v1067 = vsel %vm944, %v1066, %v1042
    %v1068 = vsel %vm943, %v202, %v1065
    %v1069 = vsel %vm943, 0, %v1067
    %v1070 = vmul.f32 %v1068, %v1068
    %v1071 = vmul.f32 %v1070, -0.001358992
    %v1072 = vadd.f32 %v1071, 0.041655596
    %v1073 = vmul.f32 %v1070, %v1072
    %v1074 = vadd.f32 %v1073, -0.4999988
    %v1075 = vmul.f32 %v1070, %v1074
    %v1076 = vadd.f32 1.0, %v1075
    %v1077 = vmul.f32 %v1068, %v1068
    %v1078 = vmul.f32 %v1077, -0.00019511016
    %v1079 = vadd.f32 %v1078, 0.008332121
    %v1080 = vmul.f32 %v1077, %v1079
    %v1081 = vadd.f32 %v1080, -0.16666654
    %v1082 = vmul.f32 %v1077, %v1081
    %v1083 = vadd.f32 %v1082, 1.0
    %v1084 = vmul.f32 %v1083, %v1068
    %vm1085 = vweird.f32 %v202
    %v1086 = vand.u32 %v1069, 3
    %vm1087 = vcmp.lt.s32.totalorder %v1086, 2
    %vm1088 = vcmp.eq.s32.totalorder %v1086, 0
    %v1089 = vxor.u32 %v1084, 2147483648
    %v1090 = vsel %vm1088, %v1076, %v1089
    %vm1091 = vcmp.eq.s32.totalorder %v1086, 2
    %v1092 = vxor.u32 %v1076, 2147483648
    %v1093 = vsel %vm1091, %v1092, %v1084
    %v1094 = vsel %vm1087, %v1090, %v1093
    %v1095 = vsel %vm1085, nan, %v1094
    %v1096 = vand.u32 2147483647, %v203
    %vm1097 = vcmp.le.f32.partialorder %v1096, 0.7853982
    %vm1098 = vcmp.lt.s32.totalorder %v203, 0
    %v1099 = vand.u32 %v203, 2139095040
    %v1100 = vshrl.u32 %v1099, 23
    %v1101 = vsub.s32 %v1100, 127
    %v1102 = vand.u32 2147483647, %v203
    %v1103 = vand.u32 %v1102, 8388607
    %v1104 = vor.u32 %v1103, 8388608
    %v1105 = vsub.s32 0, %v1104
    %v1106 = vadd.s32 %v1101, 1
    %vm1107 = vcmp.gt.s32.totalorder %v1106, 0
    %v1108 = vsel %vm1107, %v1106, 0
    %v1109 = vshrl.u32 %v1108, 5
    %v1110 = vand.u32 %v1108, 31
    %v1111 = vsub.s32 32, %v1110
    %v1112 = vshrl.u32 683565275, %v1111
    %v1113 = vshll.u32 683565275, %v1110
    %v1114 = vshrl.u32 2475754826, %v1111
    %v1115 = vor.u32 %v1113, %v1114
    %v1116 = vshll.u32 2475754826, %v1110
    %v1117 = vshrl.u32 2131351028, %v1111
    %v1118 = vor.u32 %v1116, %v1117
    %v1119 = vshll.u32 2131351028, %v1110
    %v1120 = vshrl.u32 2102212464, %v1111
    %v1121 = vor.u32 %v1119, %v1120
    %v1122 = vshll.u32 2102212464, %v1110
    %v1123 = vshrl.u32 920167782, %v1111
    %v1124 = vor.u32 %v1122, %v1123
    %v1125 = vshll.u32 920167782, %v1110
    %v1126 = vshrl.u32 1326507024, %v1111
    %v1127 = vor.u32 %v1125, %v1126
    %vm1128 = vcmp.lt.s32.totalorder %v1109, 1
    %vm1129 = vcmp.lt.s32.totalorder %v1109, 2
    %vm1130 = vcmp.lt.s32.totalorder %v1109, 3
    %vm1131 = vcmp.lt.s32.totalorder %v1109, 4
    %v1132 = vsel %vm1128, %v1112, %v1115
    %v1133 = vsel %vm1131, %v1121, 2102212464
    %v1134 = vsel %vm1130, %v1118, %v1133
    %v1135 = vsel %vm1129, %v1132, %v1134
    %v1136 = vsel %vm1128, %v1115, %v1118
    %v1137 = vsel %vm1131, %v1124, 920167782
    %v1138 = vsel %vm1130, %v1121, %v1137
    %v1139 = vsel %vm1129, %v1136, %v1138
    %v1140 = vsel %vm1128, %v1118, %v1121
    %v1141 = vsel %vm1131, %v1127, 1326507024
    %v1142 = vsel %vm1130, %v1124, %v1141
    %v1143 = vsel %vm1129, %v1140, %v1142
    %v1144 = vshll.u32 %v1104, 8
    %v1145 = vand.u32 %v1144, 65535
    %v1146 = vshrl.u32 %v1144, 16
    %v1147 = vand.u32 %v1143, 65535
    %v1148 = vshrl.u32 %v1143, 16
    %v1149 = vmul.u32 %v1145, %v1147
    %v1150 = vmul.u32 %v1145, %v1148
    %v1151 = vmul.u32 %v1146, %v1147
    %v1152 = vmul.u32 %v1146, %v1148
    %v1153 = vshll.u32 %v1150, 16
    %v1154 = vshrl.u32 %v1150, 16
    %v1155 = vshll.u32 %v1151, 16
    %v1156 = vshrl.u32 %v1151, 16
    %vm1157 = vc.u32 %v1149, %v1153
    %v1158 = vsel %vm1157, 1, 0
    %v1159 = vadd.s32 %v1149, %v1153
    %v1160 = vadd.s32 %v1152, %v1158
    %vm1161 = vc.u32 %v1159, %v1155
    %v1162 = vsel %vm1161, 1, 0
    %v1163 = vadd.s32 %v1159, %v1155
    %v1164 = vadd.s32 %v1160, %v1162
    %v1165 = vadd.s32 %v1164, %v1154
    %v1166 = vadd.s32 %v1165, %v1156
    %v1167 = vand.u32 %v1144, 65535
    %v1168 = vshrl.u32 %v1144, 16
    %v1169 = vand.u32 %v1139, 65535
    %v1170 = vshrl.u32 %v1139, 16
    %v1171 = vmul.u32 %v1167, %v1169
    %v1172 = vmul.u32 %v1167, %v1170
    %v1173 = vmul.u32 %v1168, %v1169
    %v1174 = vmul.u32 %v1168, %v1170
    %v1175 = vshll.u32 %v1172, 16
    %v1176 = vshrl.u32 %v1172, 16
    %v1177 = vshll.u32 %v1173, 16
    %v1178 = vshrl.u32 %v1173, 16
    %vm1179 = vc.u32 %v1171, %v1175
    %v1180 = vsel %vm1179, 1, 0
    %v1181 = vadd.s32 %v1171, %v1175
    %v1182 = vadd.s32 %v1174, %v1180
    %vm1183 = vc.u32 %v1181, %v1177
    %v1184 = vsel %vm1183, 1, 0
    %v1185 = vadd.s32 %v1181, %v1177
    %v1186 = vadd.s32 %v1182, %v1184
    %v1187 = vadd.s32 %v1186, %v1176
    %v1188 = vadd.s32 %v1187, %v1178
    %v1189 = vmul.u32 %v1144, %v1135
    %v1190 = vadd.s32 %v1166, %v1185
    %vm1191 = vc.u32 %v1166, %v1185
    %v1192 = vadd.s32 %v1188, 1
    %v1193 = vsel %vm1191, %v1192, %v1188
    %v1194 = vadd.s32 %v1189, %v1193
    %v1195 = vadd.s32 %v1194, 536870912
    %v1196 = vshrl.u32 %v1195, 30
    %v1197 = vshll.u32 %v1196, 30
    %v1198 = vsub.s32 %v1194, %v1197
    %vm1199 = vcmp.lt.s32.totalorder %v1198, 0
    %v1200 = vsub.s32 0, %v1198
    %v1201 = vsel %vm1199, %v1200, %v1198
    %v1202 = vclz %v1201
    %v1203 = vsub.s32 %v1202, 2
    %vm1204 = vcmp.gt.s32.totalorder 0, %v1203
    %v1205 = vsel %vm1204, 0, %v1203
    %v1206 = vsub.s32 32, %v1205
    %v1207 = vshll.u32 %v1198, %v1205
    %v1208 = vshrl.u32 %v1190, %v1206
    %v1209 = vor.u32 %v1207, %v1208
    %v1210 = vsub.s32 4294967266, %v1205
    %v1211 = vadd.s32 %v1210, 127
    %v1212 = vshll.u32 %v1211, 23
    %v1213 = vor.u32 4788187, %v1212
    %v1214 = vand.u32 2147483647, %v1213
    %v1216 = vcvt.s32.f32 %v1209
    %v1217 = vmul.f32 %v1216, %v1214
    %v1218 = vxor.u32 %v1217, 2147483648
    %v1219 = vsel %vm1098, %v1218, %v1217
    %v1220 = vsub.s32 4, %v1196
    %v1221 = vsel %vm1098, %v1220, %v1196
    %v1222 = vsel %vm1097, %v203, %v1219
    %v1223 = vsel %vm1097, 0, %v1221
    %v1224 = vmul.f32 %v1222, %v1222
    %v1225 = vmul.f32 %v1224, -0.001358992
    %v1226 = vadd.f32 %v1225, 0.041655596
    %v1227 = vmul.f32 %v1224, %v1226
    %v1228 = vadd.f32 %v1227, -0.4999988
    %v1229 = vmul.f32 %v1224, %v1228
    %v1230 = vadd.f32 1.0, %v1229
    %v1231 = vmul.f32 %v1222, %v1222
    %v1232 = vmul.f32 %v1231, -0.00019511016
    %v1233 = vadd.f32 %v1232, 0.008332121
    %v1234 = vmul.f32 %v1231, %v1233
    %v1235 = vadd.f32 %v1234, -0.16666654
    %v1236 = vmul.f32 %v1231, %v1235
    %v1237 = vadd.f32 %v1236, 1.0
    %v1238 = vmul.f32 %v1237, %v1222
    %vm1239 = vweird.f32 %v203
    %v1240 = vand.u32 %v1223, 3
    %vm1241 = vcmp.lt.s32.totalorder %v1240, 2
    %vm1242 = vcmp.eq.s32.totalorder %v1240, 0
    %v1243 = vxor.u32 %v1238, 2147483648
    %v1244 = vsel %vm1242, %v1230, %v1243
    %vm1245 = vcmp.eq.s32.totalorder %v1240, 2
    %v1246 = vxor.u32 %v1230, 2147483648
    %v1247 = vsel %vm1245, %v1246, %v1238
    %v1248 = vsel %vm1241, %v1244, %v1247
    %v1249 = vsel %vm1239, nan, %v1248
    %v1250 = vand.u32 2147483647, %v204
    %vm1251 = vcmp.le.f32.partialorder %v1250, 0.7853982
    %vm1252 = vcmp.lt.s32.totalorder %v204, 0
    %v1253 = vand.u32 %v204, 2139095040
    %v1254 = vshrl.u32 %v1253, 23
    %v1255 = vsub.s32 %v1254, 127
    %v1256 = vand.u32 2147483647, %v204
    %v1257 = vand.u32 %v1256, 8388607
    %v1258 = vor.u32 %v1257, 8388608
    %v1259 = vsub.s32 0, %v1258
    %v1260 = vadd.s32 %v1255, 1
    %vm1261 = vcmp.gt.s32.totalorder %v1260, 0
    %v1262 = vsel %vm1261, %v1260, 0
    %v1263 = vshrl.u32 %v1262, 5
    %v1264 = vand.u32 %v1262, 31
    %v1265 = vsub.s32 32, %v1264
    %v1266 = vshrl.u32 683565275, %v1265
    %v1267 = vshll.u32 683565275, %v1264
    %v1268 = vshrl.u32 2475754826, %v1265
    %v1269 = vor.u32 %v1267, %v1268
    %v1270 = vshll.u32 2475754826, %v1264
    %v1271 = vshrl.u32 2131351028, %v1265
    %v1272 = vor.u32 %v1270, %v1271
    %v1273 = vshll.u32 2131351028, %v1264
    %v1274 = vshrl.u32 2102212464, %v1265
    %v1275 = vor.u32 %v1273, %v1274
    %v1276 = vshll.u32 2102212464, %v1264
    %v1277 = vshrl.u32 920167782, %v1265
    %v1278 = vor.u32 %v1276, %v1277
    %v1279 = vshll.u32 920167782, %v1264
    %v1280 = vshrl.u32 1326507024, %v1265
    %v1281 = vor.u32 %v1279, %v1280
    %vm1282 = vcmp.lt.s32.totalorder %v1263, 1
    %vm1283 = vcmp.lt.s32.totalorder %v1263, 2
    %vm1284 = vcmp.lt.s32.totalorder %v1263, 3
    %vm1285 = vcmp.lt.s32.totalorder %v1263, 4
    %v1286 = vsel %vm1282, %v1266, %v1269
    %v1287 = vsel %vm1285, %v1275, 2102212464
    %v1288 = vsel %vm1284, %v1272, %v1287
    %v1289 = vsel %vm1283, %v1286, %v1288
    %v1290 = vsel %vm1282, %v1269, %v1272
    %v1291 = vsel %vm1285, %v1278, 920167782
    %v1292 = vsel %vm1284, %v1275, %v1291
    %v1293 = vsel %vm1283, %v1290, %v1292
    %v1294 = vsel %vm1282, %v1272, %v1275
    %v1295 = vsel %vm1285, %v1281, 1326507024
    %v1296 = vsel %vm1284, %v1278, %v1295
    %v1297 = vsel %vm1283, %v1294, %v1296
    %v1298 = vshll.u32 %v1258, 8
    %v1299 = vand.u32 %v1298, 65535
    %v1300 = vshrl.u32 %v1298, 16
    %v1301 = vand.u32 %v1297, 65535
    %v1302 = vshrl.u32 %v1297, 16
    %v1303 = vmul.u32 %v1299, %v1301
    %v1304 = vmul.u32 %v1299, %v1302
    %v1305 = vmul.u32 %v1300, %v1301
    %v1306 = vmul.u32 %v1300, %v1302
    %v1307 = vshll.u32 %v1304, 16
    %v1308 = vshrl.u32 %v1304, 16
    %v1309 = vshll.u32 %v1305, 16
    %v1310 = vshrl.u32 %v1305, 16
    %vm1311 = vc.u32 %v1303, %v1307
    %v1312 = vsel %vm1311, 1, 0
    %v1313 = vadd.s32 %v1303, %v1307
    %v1314 = vadd.s32 %v1306, %v1312
    %vm1315 = vc.u32 %v1313, %v1309
    %v1316 = vsel %vm1315, 1, 0
    %v1317 = vadd.s32 %v1313, %v1309
    %v1318 = vadd.s32 %v1314, %v1316
    %v1319 = vadd.s32 %v1318, %v1308
    %v1320 = vadd.s32 %v1319, %v1310
    %v1321 = vand.u32 %v1298, 65535
    %v1322 = vshrl.u32 %v1298, 16
    %v1323 = vand.u32 %v1293, 65535
    %v1324 = vshrl.u32 %v1293, 16
    %v1325 = vmul.u32 %v1321, %v1323
    %v1326 = vmul.u32 %v1321, %v1324
    %v1327 = vmul.u32 %v1322, %v1323
    %v1328 = vmul.u32 %v1322, %v1324
    %v1329 = vshll.u32 %v1326, 16
    %v1330 = vshrl.u32 %v1326, 16
    %v1331 = vshll.u32 %v1327, 16
    %v1332 = vshrl.u32 %v1327, 16
    %vm1333 = vc.u32 %v1325, %v1329
    %v1334 = vsel %vm1333, 1, 0
    %v1335 = vadd.s32 %v1325, %v1329
    %v1336 = vadd.s32 %v1328, %v1334
    %vm1337 = vc.u32 %v1335, %v1331
    %v1338 = vsel %vm1337, 1, 0
    %v1339 = vadd.s32 %v1335, %v1331
    %v1340 = vadd.s32 %v1336, %v1338
    %v1341 = vadd.s32 %v1340, %v1330
    %v1342 = vadd.s32 %v1341, %v1332
    %v1343 = vmul.u32 %v1298, %v1289
    %v1344 = vadd.s32 %v1320, %v1339
    %vm1345 = vc.u32 %v1320, %v1339
    %v1346 = vadd.s32 %v1342, 1
    %v1347 = vsel %vm1345, %v1346, %v1342
    %v1348 = vadd.s32 %v1343, %v1347
    %v1349 = vadd.s32 %v1348, 536870912
    %v1350 = vshrl.u32 %v1349, 30
    %v1351 = vshll.u32 %v1350, 30
    %v1352 = vsub.s32 %v1348, %v1351
    %vm1353 = vcmp.lt.s32.totalorder %v1352, 0
    %v1354 = vsub.s32 0, %v1352
    %v1355 = vsel %vm1353, %v1354, %v1352
    %v1356 = vclz %v1355
    %v1357 = vsub.s32 %v1356, 2
    %vm1358 = vcmp.gt.s32.totalorder 0, %v1357
    %v1359 = vsel %vm1358, 0, %v1357
    %v1360 = vsub.s32 32, %v1359
    %v1361 = vshll.u32 %v1352, %v1359
    %v1362 = vshrl.u32 %v1344, %v1360
    %v1363 = vor.u32 %v1361, %v1362
    %v1364 = vsub.s32 4294967266, %v1359
    %v1365 = vadd.s32 %v1364, 127
    %v1366 = vshll.u32 %v1365, 23
    %v1367 = vor.u32 4788187, %v1366
    %v1368 = vand.u32 2147483647, %v1367
    %v1370 = vcvt.s32.f32 %v1363
    %v1371 = vmul.f32 %v1370, %v1368
    %v1372 = vxor.u32 %v1371, 2147483648
    %v1373 = vsel %vm1252, %v1372, %v1371
    %v1374 = vsub.s32 4, %v1350
    %v1375 = vsel %vm1252, %v1374, %v1350
    %v1376 = vsel %vm1251, %v204, %v1373
    %v1377 = vsel %vm1251, 0, %v1375
    %v1378 = vmul.f32 %v1376, %v1376
    %v1379 = vmul.f32 %v1378, -0.001358992
    %v1380 = vadd.f32 %v1379, 0.041655596
    %v1381 = vmul.f32 %v1378, %v1380
    %v1382 = vadd.f32 %v1381, -0.4999988
    %v1383 = vmul.f32 %v1378, %v1382
    %v1384 = vadd.f32 1.0, %v1383
    %v1385 = vmul.f32 %v1376, %v1376
    %v1386 = vmul.f32 %v1385, -0.00019511016
    %v1387 = vadd.f32 %v1386, 0.008332121
    %v1388 = vmul.f32 %v1385, %v1387
    %v1389 = vadd.f32 %v1388, -0.16666654
    %v1390 = vmul.f32 %v1385, %v1389
    %v1391 = vadd.f32 %v1390, 1.0
    %v1392 = vmul.f32 %v1391, %v1376
    %vm1393 = vweird.f32 %v204
    %v1394 = vand.u32 %v1377, 3
    %vm1395 = vcmp.lt.s32.totalorder %v1394, 2
    %vm1396 = vcmp.eq.s32.totalorder %v1394, 0
    %v1397 = vxor.u32 %v1392, 2147483648
    %v1398 = vsel %vm1396, %v1384, %v1397
    %vm1399 = vcmp.eq.s32.totalorder %v1394, 2
    %v1400 = vxor.u32 %v1384, 2147483648
    %v1401 = vsel %vm1399, %v1400, %v1392
    %v1402 = vsel %vm1395, %v1398, %v1401
    %v1403 = vsel %vm1393, nan, %v1402
    %v1404 = vand.u32 2147483647, %v205
    %vm1405 = vcmp.le.f32.partialorder %v1404, 0.7853982
    %vm1406 = vcmp.lt.s32.totalorder %v205, 0
    %v1407 = vand.u32 %v205, 2139095040
    %v1408 = vshrl.u32 %v1407, 23
    %v1409 = vsub.s32 %v1408, 127
    %v1410 = vand.u32 2147483647, %v205
    %v1411 = vand.u32 %v1410, 8388607
    %v1412 = vor.u32 %v1411, 8388608
    %v1413 = vsub.s32 0, %v1412
    %v1414 = vadd.s32 %v1409, 1
    %vm1415 = vcmp.gt.s32.totalorder %v1414, 0
    %v1416 = vsel %vm1415, %v1414, 0
    %v1417 = vshrl.u32 %v1416, 5
    %v1418 = vand.u32 %v1416, 31
    %v1419 = vsub.s32 32, %v1418
    %v1420 = vshrl.u32 683565275, %v1419
    %v1421 = vshll.u32 683565275, %v1418
    %v1422 = vshrl.u32 2475754826, %v1419
    %v1423 = vor.u32 %v1421, %v1422
    %v1424 = vshll.u32 2475754826, %v1418
    %v1425 = vshrl.u32 2131351028, %v1419
    %v1426 = vor.u32 %v1424, %v1425
    %v1427 = vshll.u32 2131351028, %v1418
    %v1428 = vshrl.u32 2102212464, %v1419
    %v1429 = vor.u32 %v1427, %v1428
    %v1430 = vshll.u32 2102212464, %v1418
    %v1431 = vshrl.u32 920167782, %v1419
    %v1432 = vor.u32 %v1430, %v1431
    %v1433 = vshll.u32 920167782, %v1418
    %v1434 = vshrl.u32 1326507024, %v1419
    %v1435 = vor.u32 %v1433, %v1434
    %vm1436 = vcmp.lt.s32.totalorder %v1417, 1
    %vm1437 = vcmp.lt.s32.totalorder %v1417, 2
    %vm1438 = vcmp.lt.s32.totalorder %v1417, 3
    %vm1439 = vcmp.lt.s32.totalorder %v1417, 4
    %v1440 = vsel %vm1436, %v1420, %v1423
    %v1441 = vsel %vm1439, %v1429, 2102212464
    %v1442 = vsel %vm1438, %v1426, %v1441
    %v1443 = vsel %vm1437, %v1440, %v1442
    %v1444 = vsel %vm1436, %v1423, %v1426
    %v1445 = vsel %vm1439, %v1432, 920167782
    %v1446 = vsel %vm1438, %v1429, %v1445
    %v1447 = vsel %vm1437, %v1444, %v1446
    %v1448 = vsel %vm1436, %v1426, %v1429
    %v1449 = vsel %vm1439, %v1435, 1326507024
    %v1450 = vsel %vm1438, %v1432, %v1449
    %v1451 = vsel %vm1437, %v1448, %v1450
    %v1452 = vshll.u32 %v1412, 8
    %v1453 = vand.u32 %v1452, 65535
    %v1454 = vshrl.u32 %v1452, 16
    %v1455 = vand.u32 %v1451, 65535
    %v1456 = vshrl.u32 %v1451, 16
    %v1457 = vmul.u32 %v1453, %v1455
    %v1458 = vmul.u32 %v1453, %v1456
    %v1459 = vmul.u32 %v1454, %v1455
    %v1460 = vmul.u32 %v1454, %v1456
    %v1461 = vshll.u32 %v1458, 16
    %v1462 = vshrl.u32 %v1458, 16
    %v1463 = vshll.u32 %v1459, 16
    %v1464 = vshrl.u32 %v1459, 16
    %vm1465 = vc.u32 %v1457, %v1461
    %v1466 = vsel %vm1465, 1, 0
    %v1467 = vadd.s32 %v1457, %v1461
    %v1468 = vadd.s32 %v1460, %v1466
    %vm1469 = vc.u32 %v1467, %v1463
    %v1470 = vsel %vm1469, 1, 0
    %v1471 = vadd.s32 %v1467, %v1463
    %v1472 = vadd.s32 %v1468, %v1470
    %v1473 = vadd.s32 %v1472, %v1462
    %v1474 = vadd.s32 %v1473, %v1464
    %v1475 = vand.u32 %v1452, 65535
    %v1476 = vshrl.u32 %v1452, 16
    %v1477 = vand.u32 %v1447, 65535
    %v1478 = vshrl.u32 %v1447, 16
    %v1479 = vmul.u32 %v1475, %v1477
    %v1480 = vmul.u32 %v1475, %v1478
    %v1481 = vmul.u32 %v1476, %v1477
    %v1482 = vmul.u32 %v1476, %v1478
    %v1483 = vshll.u32 %v1480, 16
    %v1484 = vshrl.u32 %v1480, 16
    %v1485 = vshll.u32 %v1481, 16
    %v1486 = vshrl.u32 %v1481, 16
    %vm1487 = vc.u32 %v1479, %v1483
    %v1488 = vsel %vm1487, 1, 0
    %v1489 = vadd.s32 %v1479, %v1483
    %v1490 = vadd.s32 %v1482, %v1488
    %vm1491 = vc.u32 %v1489, %v1485
    %v1492 = vsel %vm1491, 1, 0
    %v1493 = vadd.s32 %v1489, %v1485
    %v1494 = vadd.s32 %v1490, %v1492
    %v1495 = vadd.s32 %v1494, %v1484
    %v1496 = vadd.s32 %v1495, %v1486
    %v1497 = vmul.u32 %v1452, %v1443
    %v1498 = vadd.s32 %v1474, %v1493
    %vm1499 = vc.u32 %v1474, %v1493
    %v1500 = vadd.s32 %v1496, 1
    %v1501 = vsel %vm1499, %v1500, %v1496
    %v1502 = vadd.s32 %v1497, %v1501
    %v1503 = vadd.s32 %v1502, 536870912
    %v1504 = vshrl.u32 %v1503, 30
    %v1505 = vshll.u32 %v1504, 30
    %v1506 = vsub.s32 %v1502, %v1505
    %vm1507 = vcmp.lt.s32.totalorder %v1506, 0
    %v1508 = vsub.s32 0, %v1506
    %v1509 = vsel %vm1507, %v1508, %v1506
    %v1510 = vclz %v1509
    %v1511 = vsub.s32 %v1510, 2
    %vm1512 = vcmp.gt.s32.totalorder 0, %v1511
    %v1513 = vsel %vm1512, 0, %v1511
    %v1514 = vsub.s32 32, %v1513
    %v1515 = vshll.u32 %v1506, %v1513
    %v1516 = vshrl.u32 %v1498, %v1514
    %v1517 = vor.u32 %v1515, %v1516
    %v1518 = vsub.s32 4294967266, %v1513
    %v1519 = vadd.s32 %v1518, 127
    %v1520 = vshll.u32 %v1519, 23
    %v1521 = vor.u32 4788187, %v1520
    %v1522 = vand.u32 2147483647, %v1521
    %v1524 = vcvt.s32.f32 %v1517
    %v1525 = vmul.f32 %v1524, %v1522
    %v1526 = vxor.u32 %v1525, 2147483648
    %v1527 = vsel %vm1406, %v1526, %v1525
    %v1528 = vsub.s32 4, %v1504
    %v1529 = vsel %vm1406, %v1528, %v1504
    %v1530 = vsel %vm1405, %v205, %v1527
    %v1531 = vsel %vm1405, 0, %v1529
    %v1532 = vmul.f32 %v1530, %v1530
    %v1533 = vmul.f32 %v1532, -0.001358992
    %v1534 = vadd.f32 %v1533, 0.041655596
    %v1535 = vmul.f32 %v1532, %v1534
    %v1536 = vadd.f32 %v1535, -0.4999988
    %v1537 = vmul.f32 %v1532, %v1536
    %v1538 = vadd.f32 1.0, %v1537
    %v1539 = vmul.f32 %v1530, %v1530
    %v1540 = vmul.f32 %v1539, -0.00019511016
    %v1541 = vadd.f32 %v1540, 0.008332121
    %v1542 = vmul.f32 %v1539, %v1541
    %v1543 = vadd.f32 %v1542, -0.16666654
    %v1544 = vmul.f32 %v1539, %v1543
    %v1545 = vadd.f32 %v1544, 1.0
    %v1546 = vmul.f32 %v1545, %v1530
    %vm1547 = vweird.f32 %v205
    %v1548 = vand.u32 %v1531, 3
    %vm1549 = vcmp.lt.s32.totalorder %v1548, 2
    %vm1550 = vcmp.eq.s32.totalorder %v1548, 0
    %v1551 = vxor.u32 %v1546, 2147483648
    %v1552 = vsel %vm1550, %v1538, %v1551
    %vm1553 = vcmp.eq.s32.totalorder %v1548, 2
    %v1554 = vxor.u32 %v1538, 2147483648
    %v1555 = vsel %vm1553, %v1554, %v1546
    %v1556 = vsel %vm1549, %v1552, %v1555
    %v1557 = vsel %vm1547, nan, %v1556
    %v1558 = vmul.f32 %v241, %v479
    %v1559 = vmul.f32 %v253, %v633
    %v1560 = vmul.f32 %v265, %v787
    %v1561 = vmul.f32 %v277, %v941
    %v1562 = vmul.f32 %v289, %v1095
    %v1563 = vmul.f32 %v301, %v1249
    %v1564 = vmul.f32 %v313, %v1403
    %v1565 = vmul.f32 %v325, %v1557
    %v1566 = vand.u32 2147483647, %v1558
    %v1567 = vand.u32 2147483647, %v1559
    %v1568 = vand.u32 2147483647, %v1560
    %v1569 = vand.u32 2147483647, %v1561
    %v1570 = vand.u32 2147483647, %v1562
    %v1571 = vand.u32 2147483647, %v1563
    %v1572 = vand.u32 2147483647, %v1564
    %v1573 = vand.u32 2147483647, %v1565
    %v1574 = vmax.f32 %v1566, %v1570
    %v1575 = vmax.f32 %v1567, %v1571
    %v1576 = vmax.f32 %v1568, %v1572
    %v1577 = vmax.f32 %v1569, %v1573
    %v1578 = vmax.f32 %v1574, %v1575
    %v1579 = vmax.f32 %v1576, %v1577
    %v1580 = vmax.f32 %v1578, %v1579
    %1581 = vmax.xlane.f32.xlu0 %v1580
    %v1582 = vpop.xlane.xlu0 %1581
    %v1583 = vadd.f32 %v1582, 1e-12
    %v1584 = vrcp.pop %v1583
    %v1585 = vmul.f32 %v1558, %v1584
    %v1586 = vmul.f32 %v1559, %v1584
    %v1587 = vmul.f32 %v1560, %v1584
    %v1588 = vmul.f32 %v1561, %v1584
    %v1589 = vmul.f32 %v1562, %v1584
    %v1590 = vmul.f32 %v1563, %v1584
    %v1591 = vmul.f32 %v1564, %v1584
    %v1592 = vmul.f32 %v1565, %v1584
    %v1593 = vmul.f32 %v1585, %v1585
    %v1594 = vmul.f32 %v1586, %v1586
    %v1595 = vmul.f32 %v1587, %v1587
    %v1596 = vmul.f32 %v1588, %v1588
    %v1597 = vmul.f32 %v1589, %v1589
    %v1598 = vmul.f32 %v1590, %v1590
    %v1599 = vmul.f32 %v1591, %v1591
    %v1600 = vmul.f32 %v1592, %v1592
    %v1601 = vadd.f32 %v1593, %v1594
    %v1602 = vadd.f32 %v1601, %v1595
    %v1603 = vadd.f32 %v1602, %v1596
    %v1604 = vadd.f32 %v1603, %v1597
    %v1605 = vadd.f32 %v1604, %v1598
    %v1606 = vadd.f32 %v1605, %v1599
    %v1607 = vadd.f32 %v1606, %v1600
    %1608 = vadd.xlane.f32.xlu0 %v1607
    %v1609 = vpop.xlane.xlu0 %1608
    %v1610 = vadd.f32 %v1609, 1e-06
    %v1611 = vrsqrt.pop %v1610
    %v1612 = vmul.f32 %v1611, %v1610
    %v1613 = vmul.f32 %v1612, %v1611
    %v1614 = vmul.f32 0.5, %v1613
    %v1615 = vsub.f32 1.5, %v1614
    %v1616 = vmul.f32 %v1611, %v1615
    %vm1617 = vweird.f32 %v1610
    %vm1618 = vweird.f32 %v1611
    %vm1619 = vmor %vm1617, %vm1618
    %v1620 = vsel %vm1619, %v1611, %v1616
    %v1621 = vmul.f32 %v1585, %v1620
    %v1622 = vmul.f32 %v1586, %v1620
    %v1623 = vmul.f32 %v1587, %v1620
    %v1624 = vmul.f32 %v1588, %v1620
    %v1625 = vmul.f32 %v1589, %v1620
    %v1626 = vmul.f32 %v1590, %v1620
    %v1627 = vmul.f32 %v1591, %v1620
    %v1628 = vmul.f32 %v1592, %v1620
    %v1629 = vpack.c.bf16 %v1622, %v1621
    %v1630 = vpack.c.bf16 %v1624, %v1623
    %v1631 = vpack.c.bf16 %v1626, %v1625
    %v1632 = vpack.c.bf16 %v1628, %v1627
    %1633 = vst [vmem:[#allocation3] sm:$0xff] %v1629
    %1634 = vst [vmem:[#allocation3 + $0x8] sm:$0xff] %v1630
    %1635 = vst [vmem:[#allocation3 + $0x10] sm:$0xff] %v1631
    %1636 = vst [vmem:[#allocation3 + $0x18] sm:$0xff] %v1632
    // Predicated region
    $region6: #{tpu_custom_call.1} parent=1 // pred_check
      _
    $region7: #{tpu_custom_call.1} parent=1 // pred_check_branch
      %1638 = sbr.rel (0) target = $region9
    $region8: #{tpu_custom_call.1} parent=1 // pred_region
      %1640 = vsyncadd [#allocation4], 0
      %s1642 = sshll.u32 [#allocation3], 4
      %s1643 = int_to_ptr.vmem [resolvable:$true] %s1642
      %s1644 = sshll.u32 %s1, 4
      %s1645 = int_to_ptr.hbm [resolvable:$true] %s1644
      %1647 = dma.vmem_to_hbm [thread:$0]  %s1643, 512, %s1645, [#allocation4]
    $region9: #{tpu_custom_call.1} parent=1 // pred_fallthru
      _
    // Predicated region
    $region10: #{tpu_custom_call.1} parent=1 // pred_check
      _
    $region11: #{tpu_custom_call.1} parent=1 // pred_check_branch
      %1649 = sbr.rel (0) target = $region13
    $region12: #{tpu_custom_call.1} parent=1 // pred_region
      %1651 = dma.done [#allocation4], 512
    $region13: #{tpu_custom_call.1} parent=1 // pred_fallthru
      _
    %1652 = vsyncpa [#allocation4], 1

// kernel: tpu_custom_call.1
$region0: #{tpu_custom_call.1}
  #allocation0 [shape = 'u32[]', space=smem, size = 0x4, offset = 0x4, fixed_abs, tag = 'smem constant byte address 0x4 - core index']
  #allocation1 [shape = 'u32[72,128]{1,0:T(1,128)}', space=vmem, size = 0x9000, scoped, tag = 'internal scratch']
  %s0 = inlined_call_operand.hbm [shape: bf16[8,1024], index: 0, kind: input, shape index: {}]
  %s1 = inlined_call_operand.hbm [shape: bf16[8,1024], index: 1, kind: output, shape index: {}]
  %s2 = sld [smem:[#allocation0]]
  $region18: #{tpu_custom_call.1} parent=0
    _
  %s4 = ssub.s32 1, %s2
  %s5 = scalar_select 0, %s4, %s2
  $region1: #{tpu_custom_call.1} parent=0
    #allocation2 [shape = 'u8[16384]{0}', space=vmem, size = 0x4000, scoped, tag = 'input window, operand 0, single buffered']
    #allocation3 [shape = 's32[1]{0}', space=sflag, size = 0x4, scoped, tag = 'scoped memory for tpu_custom_call.1']
    #allocation4 [shape = 's32[1]{0}', space=sflag, size = 0x4, scoped, tag = 'scoped memory for tpu_custom_call.1']
    #allocation5 [shape = 'u8[16384]{0}', space=vmem, size = 0x4000, scoped, tag = 'output window, operand 0, single buffered']
    %6 = vsyncpa [#allocation3], 0
    %7 = vsyncpa [#allocation4], 0
    // Predicated region
    $region2: #{tpu_custom_call.1} parent=1 // pred_check
      _
    $region3: #{tpu_custom_call.1} parent=1 // pred_check_branch
      %9 = sbr.rel (0) target = $region5
    $region4: #{tpu_custom_call.1} parent=1 // pred_region
      %11 = vsyncadd [#allocation3], 0
      %s13 = sshll.u32 %s0, 4
      %s14 = int_to_ptr.hbm [resolvable:$true] %s13
      %s15 = sshll.u32 [#allocation2], 4
      %s16 = int_to_ptr.vmem [resolvable:$true] %s15
      %18 = dma.hbm_to_vmem [thread:$0]  %s14, 512, %s16, [#allocation3]
    $region5: #{tpu_custom_call.1} parent=1 // pred_fallthru
      _
    // Predicated region
    $region6: #{tpu_custom_call.1} parent=1 // pred_check
      _
    $region7: #{tpu_custom_call.1} parent=1 // pred_check_branch
      %20 = sbr.rel (0) target = $region9
    $region8: #{tpu_custom_call.1} parent=1 // pred_region
      %22 = dma.done [#allocation3], 512
    $region9: #{tpu_custom_call.1} parent=1 // pred_fallthru
      _
    %v23 = vld [vmem:[#allocation2] sm:$0xff]
    %v24 = vld [vmem:[#allocation2 + $0x8] sm:$0xff]
    %v25 = vld [vmem:[#allocation2 + $0x10] sm:$0xff]
    %v26 = vld [vmem:[#allocation2 + $0x18] sm:$0xff]
    %v27 = vunpack.c.l.bf16 %v23
    %v28 = vunpack.c.h.bf16 %v23
    %v29 = vunpack.c.l.bf16 %v24
    %v30 = vunpack.c.h.bf16 %v24
    %v31 = vunpack.c.l.bf16 %v25
    %v32 = vunpack.c.h.bf16 %v25
    %v33 = vunpack.c.l.bf16 %v26
    %v34 = vunpack.c.h.bf16 %v26
    %v35 = vand.u32 2147483647, %v27
    %v36 = vand.u32 2147483647, %v28
    %v37 = vand.u32 2147483647, %v29
    %v38 = vand.u32 2147483647, %v30
    %v39 = vand.u32 2147483647, %v31
    %v40 = vand.u32 2147483647, %v32
    %v41 = vand.u32 2147483647, %v33
    %v42 = vand.u32 2147483647, %v34
    %v43 = vmax.f32 %v35, %v39
    %v44 = vmax.f32 %v36, %v40
    %v45 = vmax.f32 %v37, %v41
    %v46 = vmax.f32 %v38, %v42
    %v47 = vmax.f32 %v43, %v44
    %v48 = vmax.f32 %v45, %v46
    %v49 = vmax.f32 %v47, %v48
    %50 = vmax.xlane.f32.xlu0 %v49
    %v51 = vpop.xlane.xlu0 %50
    %v52 = vadd.f32 %v51, 1e-12
    %v53 = vrcp.pop %v52
    %v54 = vmul.f32 %v27, %v53
    %v55 = vmul.f32 %v28, %v53
    %v56 = vmul.f32 %v29, %v53
    %v57 = vmul.f32 %v30, %v53
    %v58 = vmul.f32 %v31, %v53
    %v59 = vmul.f32 %v32, %v53
    %v60 = vmul.f32 %v33, %v53
    %v61 = vmul.f32 %v34, %v53
    %v62 = vmul.f32 %v54, %v54
    %v63 = vmul.f32 %v55, %v55
    %v64 = vmul.f32 %v56, %v56
    %v65 = vmul.f32 %v57, %v57
    %v66 = vmul.f32 %v58, %v58
    %v67 = vmul.f32 %v59, %v59
    %v68 = vmul.f32 %v60, %v60
    %v69 = vmul.f32 %v61, %v61
    %v70 = vadd.f32 %v62, %v63
    %v71 = vadd.f32 %v70, %v64
    %v72 = vadd.f32 %v71, %v65
    %v73 = vadd.f32 %v72, %v66
    %v74 = vadd.f32 %v73, %v67
    %v75 = vadd.f32 %v74, %v68
    %v76 = vadd.f32 %v75, %v69
    %77 = vadd.xlane.f32.xlu0 %v76
    %v78 = vpop.xlane.xlu0 %77
    %v79 = vadd.f32 %v78, 1e-06
    %v80 = vrsqrt.pop %v79
    %v81 = vmul.f32 %v80, %v79
    %v82 = vmul.f32 %v81, %v80
    %v83 = vmul.f32 0.5, %v82
    %v84 = vsub.f32 1.5, %v83
    %v85 = vmul.f32 %v80, %v84
    %vm86 = vweird.f32 %v79
    %vm87 = vweird.f32 %v80
    %vm88 = vmor %vm86, %vm87
    %v89 = vsel %vm88, %v80, %v85
    %v90 = vmul.f32 %v54, %v89
    %v91 = vmul.f32 %v55, %v89
    %v92 = vmul.f32 %v56, %v89
    %v93 = vmul.f32 %v57, %v89
    %v94 = vmul.f32 %v58, %v89
    %v95 = vmul.f32 %v59, %v89
    %v96 = vmul.f32 %v60, %v89
    %v97 = vmul.f32 %v61, %v89
    %v98 = vpack.c.bf16 %v91, %v90
    %v99 = vpack.c.bf16 %v93, %v92
    %v100 = vpack.c.bf16 %v95, %v94
    %v101 = vpack.c.bf16 %v97, %v96
    %102 = vst [vmem:[#allocation5] sm:$0xff] %v98
    %103 = vst [vmem:[#allocation5 + $0x8] sm:$0xff] %v99
    %104 = vst [vmem:[#allocation5 + $0x10] sm:$0xff] %v100
    %105 = vst [vmem:[#allocation5 + $0x18] sm:$0xff] %v101
    // Predicated region
    $region10: #{tpu_custom_call.1} parent=1 // pred_check
      _
    $region11: #{tpu_custom_call.1} parent=1 // pred_check_branch
      %107 = sbr.rel (0) target = $region13
    $region12: #{tpu_custom_call.1} parent=1 // pred_region
      %109 = vsyncadd [#allocation4], 0
      %s111 = sshll.u32 [#allocation5], 4
      %s112 = int_to_ptr.vmem [resolvable:$true] %s111
      %s113 = sshll.u32 %s1, 4
      %s114 = int_to_ptr.hbm [resolvable:$true] %s113
      %116 = dma.vmem_to_hbm [thread:$0]  %s112, 512, %s114, [#allocation4]
    $region13: #{tpu_custom_call.1} parent=1 // pred_fallthru
      _
    // Predicated region
    $region14: #{tpu_custom_call.1} parent=1 // pred_check
      _
    $region15: #{tpu_custom_call.1} parent=1 // pred_check_branch
      %118 = sbr.rel (0) target = $region17
    $region16: #{tpu_custom_call.1} parent=1 // pred_region
      %120 = dma.done [#allocation4], 512
    $region17: #{tpu_custom_call.1} parent=1 // pred_fallthru
      _
    %121 = vsyncpa [#allocation3], 1
    %122 = vsyncpa [#allocation4], 1

</llo_original>
